<compile_context>
chip_gen: v5e
topology: v5e:2x2
jax: 0.10.0
libtpu: 0.0.40
codegen_flags: <defaults>
</compile_context>

<pallas_src>
import jax
import jax.numpy as jnp
import numpy as np
from jax.experimental import pallas as pl
from jax.experimental.pallas import tpu as pltpu

H1, H2, H3, OUT = 256, 128, 64, 4
_HP = jax.lax.Precision.HIGHEST  # f32-accurate MXU matmul (matches the f32 reference)


def _mlp_kernel(x_ref, w1_ref, b1_ref, w2_ref, b2_ref, w3_ref, b3_ref,
                w4_ref, b4_ref, o_ref):
    # x_ref: (bm, D)    w*_ref: (in, out)    b*_ref: (1, out)    o_ref: (bm, 4)
    f32 = jnp.float32
    h = x_ref[...]
    h = jnp.dot(h, w1_ref[...], preferred_element_type=f32, precision=_HP) + b1_ref[...]
    h = jnp.maximum(h, 0.0)
    h = jnp.dot(h, w2_ref[...], preferred_element_type=f32, precision=_HP) + b2_ref[...]
    h = jnp.maximum(h, 0.0)
    h = jnp.dot(h, w3_ref[...], preferred_element_type=f32, precision=_HP) + b3_ref[...]
    h = jnp.maximum(h, 0.0)
    o_ref[...] = (
        jnp.dot(h, w4_ref[...], preferred_element_type=f32, precision=_HP) + b4_ref[...]
    )


def weat_classifier_forward(x, params, *, block_b=256):
    """x: (B, D_in) float32; params: [(w,b)]*4 in PyTorch (out,in)/(out,) layout."""
    (w1, b1), (w2, b2), (w3, b3), (w4, b4) = params
    B, D = x.shape

    # One-time layout plumbing: (out,in) -> (in,out) weights, (out,) -> (1,out) biases.
    w1t = jnp.asarray(w1, jnp.float32).T
    w2t = jnp.asarray(w2, jnp.float32).T
    w3t = jnp.asarray(w3, jnp.float32).T
    w4t = jnp.asarray(w4, jnp.float32).T
    b1r = jnp.asarray(b1, jnp.float32).reshape(1, H1)
    b2r = jnp.asarray(b2, jnp.float32).reshape(1, H2)
    b3r = jnp.asarray(b3, jnp.float32).reshape(1, H3)
    b4r = jnp.asarray(b4, jnp.float32).reshape(1, OUT)
    x = jnp.asarray(x, jnp.float32)

    # Batch tiling: single grid step for small B; for large B tile rows and let
    # the "parallel" axis spread work across TensorCores (v7x megacore).
    bm = B if B <= block_b else block_b
    Bp = ((B + bm - 1) // bm) * bm
    if Bp != B:
        x = jnp.pad(x, ((0, Bp - B), (0, 0)))
    grid = (Bp // bm,)

    const = lambda i: (0, 0)  # weights/biases: same (whole-array) block every step
    out = pl.pallas_call(
        _mlp_kernel,
        out_shape=jax.ShapeDtypeStruct((Bp, OUT), jnp.float32),
        grid=grid,
        in_specs=[
            pl.BlockSpec((bm, D), lambda i: (i, 0)),
            pl.BlockSpec((D, H1), const),
            pl.BlockSpec((1, H1), const),
            pl.BlockSpec((H1, H2), const),
            pl.BlockSpec((1, H2), const),
            pl.BlockSpec((H2, H3), const),
            pl.BlockSpec((1, H3), const),
            pl.BlockSpec((H3, OUT), const),
            pl.BlockSpec((1, OUT), const),
        ],
        out_specs=pl.BlockSpec((bm, OUT), lambda i: (i, 0)),
        compiler_params=pltpu.CompilerParams(dimension_semantics=("parallel",)),
    )(x, w1t, b1r, w2t, b2r, w3t, b3r, w4t, b4r)

    return out[:B] if Bp != B else out


def weat_classifier_reference(x, params):
    """Pure-JAX reference mirroring the PyTorch forward."""
    (w1, b1), (w2, b2), (w3, b3), (w4, b4) = params
    h = jax.nn.relu(jnp.dot(x, w1.T, precision=_HP) + b1)
    h = jax.nn.relu(jnp.dot(h, w2.T, precision=_HP) + b2)
    h = jax.nn.relu(jnp.dot(h, w3.T, precision=_HP) + b3)
    return jnp.dot(h, w4.T, precision=_HP) + b4


def _xavier_uniform(key, out_dim, in_dim):
    a = float(np.sqrt(6.0 / (in_dim + out_dim)))
    return jax.random.uniform(key, (out_dim, in_dim), jnp.float32, -a, a)


if __name__ == "__main__":
    key = jax.random.PRNGKey(0)
    kx, k1, k2, k3, k4 = jax.random.split(key, 5)

    # Small shapes consistent with the module: batch=2, input_latent_size=32.
    B, D_IN = 2, 32
    x = jax.random.normal(kx, (B, D_IN), dtype=jnp.float32)

    # Parameters mirroring the PyTorch init: xavier_uniform_ weights, bias = 0.01.
    layer_dims = [(D_IN, H1), (H1, H2), (H2, H3), (H3, OUT)]
    params = []
    for k, (din, dout) in zip((k1, k2, k3, k4), layer_dims):
        w = _xavier_uniform(k, dout, din)                 # PyTorch (out, in) layout
        b = jnp.full((dout,), 0.01, dtype=jnp.float32)
        params.append((w, b))

    out = weat_classifier_forward(x, params)
    out = jax.block_until_ready(out)

    ref = weat_classifier_reference(x, params)
    np.testing.assert_allclose(np.asarray(out), np.asarray(ref),
                               rtol=1e-4, atol=1e-4)
    print("KERNEL_OK")
</pallas_src>

<mosaic_0001>
module attributes {stable_mosaic.version = 11 : i64} {
  func.func @_mlp_kernel(%arg0: i32, %arg1: memref<2x32xf32, #tpu.memory_space<vmem>>, %arg2: memref<32x256xf32, #tpu.memory_space<vmem>>, %arg3: memref<1x256xf32, #tpu.memory_space<vmem>>, %arg4: memref<256x128xf32, #tpu.memory_space<vmem>>, %arg5: memref<1x128xf32, #tpu.memory_space<vmem>>, %arg6: memref<128x64xf32, #tpu.memory_space<vmem>>, %arg7: memref<1x64xf32, #tpu.memory_space<vmem>>, %arg8: memref<64x4xf32, #tpu.memory_space<vmem>>, %arg9: memref<1x4xf32, #tpu.memory_space<vmem>>, %arg10: memref<2x4xf32, #tpu.memory_space<vmem>>) attributes {dimension_semantics = [#tpu.dimension_semantics<parallel>], iteration_bounds = array<i64: 1>, scalar_prefetch = 0 : i64, scratch_operands = 0 : i64, tpu.core_type = #tpu.core_type<tc>, window_params = [{transform_indices = @transform_0, window_bounds = array<i64: 2, 32>}, {pipeline_mode = #tpu.pipeline_mode<synchronous>, transform_indices = @transform_1, window_bounds = array<i64: 32, 256>}, {pipeline_mode = #tpu.pipeline_mode<synchronous>, transform_indices = @transform_2, window_bounds = array<i64: 1, 256>}, {pipeline_mode = #tpu.pipeline_mode<synchronous>, transform_indices = @transform_3, window_bounds = array<i64: 256, 128>}, {pipeline_mode = #tpu.pipeline_mode<synchronous>, transform_indices = @transform_4, window_bounds = array<i64: 1, 128>}, {pipeline_mode = #tpu.pipeline_mode<synchronous>, transform_indices = @transform_5, window_bounds = array<i64: 128, 64>}, {pipeline_mode = #tpu.pipeline_mode<synchronous>, transform_indices = @transform_6, window_bounds = array<i64: 1, 64>}, {pipeline_mode = #tpu.pipeline_mode<synchronous>, transform_indices = @transform_7, window_bounds = array<i64: 64, 4>}, {pipeline_mode = #tpu.pipeline_mode<synchronous>, transform_indices = @transform_8, window_bounds = array<i64: 1, 4>}, {transform_indices = @transform_9, window_bounds = array<i64: 2, 4>}]} {
    %c0 = arith.constant 0 : index
    %c0_0 = arith.constant 0 : index
    %0 = vector.load %arg1[%c0, %c0_0] : memref<2x32xf32, #tpu.memory_space<vmem>>, vector<2x32xf32>
    %c0_1 = arith.constant 0 : index
    %c0_2 = arith.constant 0 : index
    %1 = vector.load %arg2[%c0_1, %c0_2] : memref<32x256xf32, #tpu.memory_space<vmem>>, vector<32x256xf32>
    %cst = arith.constant dense<0.000000e+00> : vector<2x256xf32>
    %2 = tpu.matmul %0, %1, %cst {dimension_numbers = #tpu.dot_dimension_numbers<[1], [0], [0], [1], [0, 0, 1, 1], [], []>, precision = #tpu.contract_precision<fp32>} : vector<2x32xf32>, vector<32x256xf32>, vector<2x256xf32> -> vector<2x256xf32>
    %c0_3 = arith.constant 0 : index
    %c0_4 = arith.constant 0 : index
    %3 = vector.load %arg3[%c0_3, %c0_4] : memref<1x256xf32, #tpu.memory_space<vmem>>, vector<1x256xf32>
    %4 = vector.broadcast %3 : vector<1x256xf32> to vector<2x256xf32>
    %5 = arith.addf %2, %4 : vector<2x256xf32>
    %cst_5 = arith.constant 0.000000e+00 : f32
    %6 = vector.broadcast %cst_5 : f32 to vector<2x256xf32>
    %7 = arith.maximumf %5, %6 : vector<2x256xf32>
    %c0_6 = arith.constant 0 : index
    %c0_7 = arith.constant 0 : index
    %8 = vector.load %arg4[%c0_6, %c0_7] : memref<256x128xf32, #tpu.memory_space<vmem>>, vector<256x128xf32>
    %cst_8 = arith.constant dense<0.000000e+00> : vector<2x128xf32>
    %9 = tpu.matmul %7, %8, %cst_8 {dimension_numbers = #tpu.dot_dimension_numbers<[1], [0], [0], [1], [0, 0, 1, 1], [], []>, precision = #tpu.contract_precision<fp32>} : vector<2x256xf32>, vector<256x128xf32>, vector<2x128xf32> -> vector<2x128xf32>
    %c0_9 = arith.constant 0 : index
    %c0_10 = arith.constant 0 : index
    %10 = vector.load %arg5[%c0_9, %c0_10] : memref<1x128xf32, #tpu.memory_space<vmem>>, vector<1x128xf32>
    %11 = vector.broadcast %10 : vector<1x128xf32> to vector<2x128xf32>
    %12 = arith.addf %9, %11 : vector<2x128xf32>
    %cst_11 = arith.constant 0.000000e+00 : f32
    %13 = vector.broadcast %cst_11 : f32 to vector<2x128xf32>
    %14 = arith.maximumf %12, %13 : vector<2x128xf32>
    %c0_12 = arith.constant 0 : index
    %c0_13 = arith.constant 0 : index
    %15 = vector.load %arg6[%c0_12, %c0_13] : memref<128x64xf32, #tpu.memory_space<vmem>>, vector<128x64xf32>
    %cst_14 = arith.constant dense<0.000000e+00> : vector<2x64xf32>
    %16 = tpu.matmul %14, %15, %cst_14 {dimension_numbers = #tpu.dot_dimension_numbers<[1], [0], [0], [1], [0, 0, 1, 1], [], []>, precision = #tpu.contract_precision<fp32>} : vector<2x128xf32>, vector<128x64xf32>, vector<2x64xf32> -> vector<2x64xf32>
    %c0_15 = arith.constant 0 : index
    %c0_16 = arith.constant 0 : index
    %17 = vector.load %arg7[%c0_15, %c0_16] : memref<1x64xf32, #tpu.memory_space<vmem>>, vector<1x64xf32>
    %18 = vector.broadcast %17 : vector<1x64xf32> to vector<2x64xf32>
    %19 = arith.addf %16, %18 : vector<2x64xf32>
    %cst_17 = arith.constant 0.000000e+00 : f32
    %20 = vector.broadcast %cst_17 : f32 to vector<2x64xf32>
    %21 = arith.maximumf %19, %20 : vector<2x64xf32>
    %c0_18 = arith.constant 0 : index
    %c0_19 = arith.constant 0 : index
    %22 = vector.load %arg8[%c0_18, %c0_19] : memref<64x4xf32, #tpu.memory_space<vmem>>, vector<64x4xf32>
    %cst_20 = arith.constant dense<0.000000e+00> : vector<2x4xf32>
    %23 = tpu.matmul %21, %22, %cst_20 {dimension_numbers = #tpu.dot_dimension_numbers<[1], [0], [0], [1], [0, 0, 1, 1], [], []>, precision = #tpu.contract_precision<fp32>} : vector<2x64xf32>, vector<64x4xf32>, vector<2x4xf32> -> vector<2x4xf32>
    %c0_21 = arith.constant 0 : index
    %c0_22 = arith.constant 0 : index
    %24 = vector.load %arg9[%c0_21, %c0_22] : memref<1x4xf32, #tpu.memory_space<vmem>>, vector<1x4xf32>
    %25 = vector.broadcast %24 : vector<1x4xf32> to vector<2x4xf32>
    %26 = arith.addf %23, %25 : vector<2x4xf32>
    %c0_23 = arith.constant 0 : index
    %c0_24 = arith.constant 0 : index
    %27 = vector.load %arg10[%c0_23, %c0_24] : memref<2x4xf32, #tpu.memory_space<vmem>>, vector<2x4xf32>
    tpu.vector_store %arg10[%c0_23, %c0_24], %26 {strides = array<i32>} : memref<2x4xf32, #tpu.memory_space<vmem>>, vector<2x4xf32>,
    return
  }
  func.func @transform_0(%arg0: i32) -> (i32, i32) {
    %c0_i32 = arith.constant 0 : i32
    %c0_i32_0 = arith.constant 0 : i32
    return %arg0, %c0_i32 : i32, i32
  }
  func.func @transform_1(%arg0: i32) -> (i32, i32) {
    %c0_i32 = arith.constant 0 : i32
    %c0_i32_0 = arith.constant 0 : i32
    %c0_i32_1 = arith.constant 0 : i32
    return %c0_i32, %c0_i32_0 : i32, i32
  }
  func.func @transform_2(%arg0: i32) -> (i32, i32) {
    %c0_i32 = arith.constant 0 : i32
    %c0_i32_0 = arith.constant 0 : i32
    %c0_i32_1 = arith.constant 0 : i32
    return %c0_i32, %c0_i32_0 : i32, i32
  }
  func.func @transform_3(%arg0: i32) -> (i32, i32) {
    %c0_i32 = arith.constant 0 : i32
    %c0_i32_0 = arith.constant 0 : i32
    %c0_i32_1 = arith.constant 0 : i32
    return %c0_i32, %c0_i32_0 : i32, i32
  }
  func.func @transform_4(%arg0: i32) -> (i32, i32) {
    %c0_i32 = arith.constant 0 : i32
    %c0_i32_0 = arith.constant 0 : i32
    %c0_i32_1 = arith.constant 0 : i32
    return %c0_i32, %c0_i32_0 : i32, i32
  }
  func.func @transform_5(%arg0: i32) -> (i32, i32) {
    %c0_i32 = arith.constant 0 : i32
    %c0_i32_0 = arith.constant 0 : i32
    %c0_i32_1 = arith.constant 0 : i32
    return %c0_i32, %c0_i32_0 : i32, i32
  }
  func.func @transform_6(%arg0: i32) -> (i32, i32) {
    %c0_i32 = arith.constant 0 : i32
    %c0_i32_0 = arith.constant 0 : i32
    %c0_i32_1 = arith.constant 0 : i32
    return %c0_i32, %c0_i32_0 : i32, i32
  }
  func.func @transform_7(%arg0: i32) -> (i32, i32) {
    %c0_i32 = arith.constant 0 : i32
    %c0_i32_0 = arith.constant 0 : i32
    %c0_i32_1 = arith.constant 0 : i32
    return %c0_i32, %c0_i32_0 : i32, i32
  }
  func.func @transform_8(%arg0: i32) -> (i32, i32) {
    %c0_i32 = arith.constant 0 : i32
    %c0_i32_0 = arith.constant 0 : i32
    %c0_i32_1 = arith.constant 0 : i32
    return %c0_i32, %c0_i32_0 : i32, i32
  }
  func.func @transform_9(%arg0: i32) -> (i32, i32) {
    %c0_i32 = arith.constant 0 : i32
    %c0_i32_0 = arith.constant 0 : i32
    return %arg0, %c0_i32 : i32, i32
  }
}

</mosaic_0001>

<llo_original>
// kernel: tpu_custom_call.1
$region0: #{tpu_custom_call.1}
  #allocation0 [shape = 'u32[]', space=smem, size = 0x4, offset = 0x4, fixed_abs, tag = 'smem constant byte address 0x4 - core index']
  #allocation1 [shape = 'u32[72,128]{1,0:T(1,128)}', space=vmem, size = 0x9000, scoped, tag = 'internal scratch']
  %s0 = inlined_call_operand.vmem [shape: f32[2,32], index: 0, kind: input, shape index: {}]
  %s1 = inlined_call_operand.vmem [shape: f32[32,256], index: 1, kind: input, shape index: {}]
  %s2 = inlined_call_operand.vmem [shape: f32[1,256], index: 2, kind: input, shape index: {}]
  %s3 = inlined_call_operand.hbm [shape: f32[256,128], index: 3, kind: input, shape index: {}]
  %s4 = inlined_call_operand.vmem [shape: f32[1,128], index: 4, kind: input, shape index: {}]
  %s5 = inlined_call_operand.vmem [shape: f32[128,64], index: 5, kind: input, shape index: {}]
  %s6 = inlined_call_operand.vmem [shape: f32[1,64], index: 6, kind: input, shape index: {}]
  %s7 = inlined_call_operand.vmem [shape: f32[64,4], index: 7, kind: input, shape index: {}]
  %s8 = inlined_call_operand.vmem [shape: f32[1,4], index: 8, kind: input, shape index: {}]
  %s9 = inlined_call_operand.hbm [shape: f32[2,4], index: 9, kind: output, shape index: {}]
  %s10 = sld [smem:[#allocation0]]
  $region50: #{tpu_custom_call.1} parent=0
    _
  %s12 = ssub.s32 1, %s10
  %s13 = scalar_select 0, %s12, %s10
  $region1: #{tpu_custom_call.1} parent=0
    #allocation2 [shape = 'u8[131072]{0}', space=vmem, size = 0x20000, scoped, tag = 'input window, operand 3, single buffered']
    #allocation3 [shape = 's32[1]{0}', space=sflag, size = 0x4, scoped, tag = 'scoped memory for tpu_custom_call.1']
    #allocation4 [shape = 's32[1]{0}', space=sflag, size = 0x4, scoped, tag = 'scoped memory for tpu_custom_call.1']
    #allocation5 [shape = 'u8[1024]{0}', space=vmem, size = 0x400, scoped, tag = 'output window, operand 0, single buffered']
    %14 = vsyncpa [#allocation3], 0
    %15 = vsyncpa [#allocation4], 0
    // Predicated region
    $region2: #{tpu_custom_call.1} parent=1 // pred_check
      _
    $region3: #{tpu_custom_call.1} parent=1 // pred_check_branch
      %17 = sbr.rel (0) target = $region5
    $region4: #{tpu_custom_call.1} parent=1 // pred_region
      _
    $region5: #{tpu_custom_call.1} parent=1 // pred_fallthru
      _
    // Predicated region
    $region6: #{tpu_custom_call.1} parent=1 // pred_check
      _
    $region7: #{tpu_custom_call.1} parent=1 // pred_check_branch
      %19 = sbr.rel (0) target = $region9
    $region8: #{tpu_custom_call.1} parent=1 // pred_region
      _
    $region9: #{tpu_custom_call.1} parent=1 // pred_fallthru
      _
    // Predicated region
    $region10: #{tpu_custom_call.1} parent=1 // pred_check
      _
    $region11: #{tpu_custom_call.1} parent=1 // pred_check_branch
      %21 = sbr.rel (0) target = $region13
    $region12: #{tpu_custom_call.1} parent=1 // pred_region
      _
    $region13: #{tpu_custom_call.1} parent=1 // pred_fallthru
      _
    // Predicated region
    $region14: #{tpu_custom_call.1} parent=1 // pred_check
      _
    $region15: #{tpu_custom_call.1} parent=1 // pred_check_branch
      %23 = sbr.rel (0) target = $region17
    $region16: #{tpu_custom_call.1} parent=1 // pred_region
      %25 = vsyncadd [#allocation3], 0
      %s26 = sshll.u32 %s3, 4
      %s27 = int_to_ptr.hbm [resolvable:$true] %s26
      %s28 = sshll.u32 [#allocation2], 4
      %s29 = int_to_ptr.vmem [resolvable:$true] %s28
      %34 = dma.hbm_to_vmem [thread:$0]  %s27, 4096, %s29, [#allocation3], 128, 128, 8
    $region17: #{tpu_custom_call.1} parent=1 // pred_fallthru
      _
    // Predicated region
    $region18: #{tpu_custom_call.1} parent=1 // pred_check
      _
    $region19: #{tpu_custom_call.1} parent=1 // pred_check_branch
      %36 = sbr.rel (0) target = $region21
    $region20: #{tpu_custom_call.1} parent=1 // pred_region
      _
    $region21: #{tpu_custom_call.1} parent=1 // pred_fallthru
      _
    // Predicated region
    $region22: #{tpu_custom_call.1} parent=1 // pred_check
      _
    $region23: #{tpu_custom_call.1} parent=1 // pred_check_branch
      %38 = sbr.rel (0) target = $region25
    $region24: #{tpu_custom_call.1} parent=1 // pred_region
      _
    $region25: #{tpu_custom_call.1} parent=1 // pred_fallthru
      _
    // Predicated region
    $region26: #{tpu_custom_call.1} parent=1 // pred_check
      _
    $region27: #{tpu_custom_call.1} parent=1 // pred_check_branch
      %40 = sbr.rel (0) target = $region29
    $region28: #{tpu_custom_call.1} parent=1 // pred_region
      _
    $region29: #{tpu_custom_call.1} parent=1 // pred_fallthru
      _
    // Predicated region
    $region30: #{tpu_custom_call.1} parent=1 // pred_check
      _
    $region31: #{tpu_custom_call.1} parent=1 // pred_check_branch
      %42 = sbr.rel (0) target = $region33
    $region32: #{tpu_custom_call.1} parent=1 // pred_region
      _
    $region33: #{tpu_custom_call.1} parent=1 // pred_fallthru
      _
    // Predicated region
    $region34: #{tpu_custom_call.1} parent=1 // pred_check
      _
    $region35: #{tpu_custom_call.1} parent=1 // pred_check_branch
      %44 = sbr.rel (0) target = $region37
    $region36: #{tpu_custom_call.1} parent=1 // pred_region
      _
    $region37: #{tpu_custom_call.1} parent=1 // pred_fallthru
      _
    // Predicated region
    $region38: #{tpu_custom_call.1} parent=1 // pred_check
      _
    $region39: #{tpu_custom_call.1} parent=1 // pred_check_branch
      %46 = sbr.rel (0) target = $region41
    $region40: #{tpu_custom_call.1} parent=1 // pred_region
      %48 = dma.done [#allocation3], 4096
    $region41: #{tpu_custom_call.1} parent=1 // pred_fallthru
      _
    %v49 = vld [vmem:[%s0] sm:$0x3]
    %v50 = vld [vmem:[%s1] sm:$0xff]
    %v51 = vld [vmem:[%s1 + $0x8] sm:$0xff]
    %v52 = vld [vmem:[%s1 + $0x10] sm:$0xff]
    %v53 = vld [vmem:[%s1 + $0x18] sm:$0xff]
    %v54 = vld [vmem:[%s1 + $0x20] sm:$0xff]
    %v55 = vld [vmem:[%s1 + $0x28] sm:$0xff]
    %v56 = vld [vmem:[%s1 + $0x30] sm:$0xff]
    %v57 = vld [vmem:[%s1 + $0x38] sm:$0xff]
    %v58 = vld [vmem:[%s2] sm:$0x3]
    %v60 = vperm.slane %v58, 0
    %v61 = vperm.slane %v58, 1
    %vm64 = vcmask 261120
    %v66 = vsel %vm64, %v49, 0
    %68 = vmatpush.msra.mxu0 0.0
    %69 = vmatpush.msra.mxu0 0.0
    %70 = vmatpush.msra.mxu0 0.0
    %71 = vmatpush.msra.mxu0 0.0
    %72 = vmatpush.msra.mxu0 0.0
    %73 = vmatpush.msra.mxu0 0.0
    %74 = vmatpush.msra.mxu0 0.0
    %75 = vmatpush.msra.mxu0 0.0
    %76 = vmatpush.msra.mxu0 0.0
    %77 = vmatpush.msra.mxu0 0.0
    %78 = vmatpush.msra.mxu0 0.0
    %79 = vmatpush.msra.mxu0 0.0
    %v80 = vand.u32 %v56, 4294901760
    %81 = vmatpush.msra.mxu0 %v80
    %v82 = vand.u32 %v54, 4294901760
    %83 = vmatpush.msra.mxu0 %v82
    %v84 = vand.u32 %v52, 4294901760
    %85 = vmatpush.msra.mxu0 %v84
    %v86 = vand.u32 %v50, 4294901760
    %87 = vmatpush.msra.mxu0 %v86
    %v88 = vand.u32 %v66, 4294901760
    %v89 = vsub.f32 %v66, %v88
    %v90 = vand.u32 %v89, 4294901760
    %v91 = vsub.f32 %v89, %v90
    %v92 = vand.u32 %v91, 4294901760
    %93 = vmatmul.f32.gmra.mxu0 %v92
    %v94 = vpop.f32.mrf.mxu0
    %v95 = vadd.f32 %v60, %v94
    %96 = vdwg.mxu0
    %97 = vmatpush.msra.mxu0 0.0
    %98 = vmatpush.msra.mxu0 0.0
    %99 = vmatpush.msra.mxu0 0.0
    %100 = vmatpush.msra.mxu0 0.0
    %101 = vmatpush.msra.mxu0 0.0
    %102 = vmatpush.msra.mxu0 0.0
    %103 = vmatpush.msra.mxu0 0.0
    %104 = vmatpush.msra.mxu0 0.0
    %105 = vmatpush.msra.mxu0 0.0
    %106 = vmatpush.msra.mxu0 0.0
    %107 = vmatpush.msra.mxu0 0.0
    %108 = vmatpush.msra.mxu0 0.0
    %v109 = vand.u32 %v56, 4294901760
    %v110 = vsub.f32 %v56, %v109
    %v111 = vand.u32 %v110, 4294901760
    %v112 = vsub.f32 %v110, %v111
    %v113 = vand.u32 %v112, 4294901760
    %114 = vmatpush.msra.mxu0 %v113
    %v115 = vand.u32 %v54, 4294901760
    %v116 = vsub.f32 %v54, %v115
    %v117 = vand.u32 %v116, 4294901760
    %v118 = vsub.f32 %v116, %v117
    %v119 = vand.u32 %v118, 4294901760
    %120 = vmatpush.msra.mxu0 %v119
    %v121 = vand.u32 %v52, 4294901760
    %v122 = vsub.f32 %v52, %v121
    %v123 = vand.u32 %v122, 4294901760
    %v124 = vsub.f32 %v122, %v123
    %v125 = vand.u32 %v124, 4294901760
    %126 = vmatpush.msra.mxu0 %v125
    %v127 = vand.u32 %v50, 4294901760
    %v128 = vsub.f32 %v50, %v127
    %v129 = vand.u32 %v128, 4294901760
    %v130 = vsub.f32 %v128, %v129
    %v131 = vand.u32 %v130, 4294901760
    %132 = vmatpush.msra.mxu0 %v131
    %v133 = vand.u32 %v66, 4294901760
    %134 = vmatmul.f32.gmra.mxu0 %v133
    %v135 = vpop.f32.mrf.mxu0
    %v136 = vadd.f32 %v95, %v135
    %137 = vdwg.mxu0
    %138 = vmatpush.msra.mxu0 0.0
    %139 = vmatpush.msra.mxu0 0.0
    %140 = vmatpush.msra.mxu0 0.0
    %141 = vmatpush.msra.mxu0 0.0
    %142 = vmatpush.msra.mxu0 0.0
    %143 = vmatpush.msra.mxu0 0.0
    %144 = vmatpush.msra.mxu0 0.0
    %145 = vmatpush.msra.mxu0 0.0
    %146 = vmatpush.msra.mxu0 0.0
    %147 = vmatpush.msra.mxu0 0.0
    %148 = vmatpush.msra.mxu0 0.0
    %149 = vmatpush.msra.mxu0 0.0
    %v150 = vand.u32 %v56, 4294901760
    %v151 = vsub.f32 %v56, %v150
    %152 = vmatpush.msra.mxu0 %v151
    %v153 = vand.u32 %v54, 4294901760
    %v154 = vsub.f32 %v54, %v153
    %155 = vmatpush.msra.mxu0 %v154
    %v156 = vand.u32 %v52, 4294901760
    %v157 = vsub.f32 %v52, %v156
    %158 = vmatpush.msra.mxu0 %v157
    %v159 = vand.u32 %v50, 4294901760
    %v160 = vsub.f32 %v50, %v159
    %161 = vmatpush.msra.mxu0 %v160
    %v162 = vand.u32 %v66, 4294901760
    %v163 = vsub.f32 %v66, %v162
    %164 = vmatmul.f32.gmra.mxu0 %v163
    %v165 = vpop.f32.mrf.mxu0
    %v166 = vadd.f32 %v136, %v165
    %167 = vdwg.mxu0
    %168 = vmatpush.msra.mxu0 0.0
    %169 = vmatpush.msra.mxu0 0.0
    %170 = vmatpush.msra.mxu0 0.0
    %171 = vmatpush.msra.mxu0 0.0
    %172 = vmatpush.msra.mxu0 0.0
    %173 = vmatpush.msra.mxu0 0.0
    %174 = vmatpush.msra.mxu0 0.0
    %175 = vmatpush.msra.mxu0 0.0
    %176 = vmatpush.msra.mxu0 0.0
    %177 = vmatpush.msra.mxu0 0.0
    %178 = vmatpush.msra.mxu0 0.0
    %179 = vmatpush.msra.mxu0 0.0
    %v180 = vand.u32 %v56, 4294901760
    %181 = vmatpush.msra.mxu0 %v180
    %v182 = vand.u32 %v54, 4294901760
    %183 = vmatpush.msra.mxu0 %v182
    %v184 = vand.u32 %v52, 4294901760
    %185 = vmatpush.msra.mxu0 %v184
    %v186 = vand.u32 %v50, 4294901760
    %187 = vmatpush.msra.mxu0 %v186
    %v188 = vand.u32 %v66, 4294901760
    %v189 = vsub.f32 %v66, %v188
    %v190 = vand.u32 %v189, 4294901760
    %191 = vmatmul.f32.gmra.mxu0 %v190
    %v192 = vpop.f32.mrf.mxu0
    %v193 = vadd.f32 %v166, %v192
    %194 = vdwg.mxu0
    %195 = vmatpush.msra.mxu0 0.0
    %196 = vmatpush.msra.mxu0 0.0
    %197 = vmatpush.msra.mxu0 0.0
    %198 = vmatpush.msra.mxu0 0.0
    %199 = vmatpush.msra.mxu0 0.0
    %200 = vmatpush.msra.mxu0 0.0
    %201 = vmatpush.msra.mxu0 0.0
    %202 = vmatpush.msra.mxu0 0.0
    %203 = vmatpush.msra.mxu0 0.0
    %204 = vmatpush.msra.mxu0 0.0
    %205 = vmatpush.msra.mxu0 0.0
    %206 = vmatpush.msra.mxu0 0.0
    %v207 = vand.u32 %v56, 4294901760
    %v208 = vsub.f32 %v56, %v207
    %v209 = vand.u32 %v208, 4294901760
    %210 = vmatpush.msra.mxu0 %v209
    %v211 = vand.u32 %v54, 4294901760
    %v212 = vsub.f32 %v54, %v211
    %v213 = vand.u32 %v212, 4294901760
    %214 = vmatpush.msra.mxu0 %v213
    %v215 = vand.u32 %v52, 4294901760
    %v216 = vsub.f32 %v52, %v215
    %v217 = vand.u32 %v216, 4294901760
    %218 = vmatpush.msra.mxu0 %v217
    %v219 = vand.u32 %v50, 4294901760
    %v220 = vsub.f32 %v50, %v219
    %v221 = vand.u32 %v220, 4294901760
    %222 = vmatpush.msra.mxu0 %v221
    %v223 = vand.u32 %v66, 4294901760
    %224 = vmatmul.f32.gmra.mxu0 %v223
    %v225 = vpop.f32.mrf.mxu0
    %v226 = vadd.f32 %v193, %v225
    %227 = vdwg.mxu0
    %228 = vmatpush.msra.mxu0 0.0
    %229 = vmatpush.msra.mxu0 0.0
    %230 = vmatpush.msra.mxu0 0.0
    %231 = vmatpush.msra.mxu0 0.0
    %232 = vmatpush.msra.mxu0 0.0
    %233 = vmatpush.msra.mxu0 0.0
    %234 = vmatpush.msra.mxu0 0.0
    %235 = vmatpush.msra.mxu0 0.0
    %236 = vmatpush.msra.mxu0 0.0
    %237 = vmatpush.msra.mxu0 0.0
    %238 = vmatpush.msra.mxu0 0.0
    %239 = vmatpush.msra.mxu0 0.0
    %v240 = vand.u32 %v56, 4294901760
    %241 = vmatpush.msra.mxu0 %v240
    %v242 = vand.u32 %v54, 4294901760
    %243 = vmatpush.msra.mxu0 %v242
    %v244 = vand.u32 %v52, 4294901760
    %245 = vmatpush.msra.mxu0 %v244
    %v246 = vand.u32 %v50, 4294901760
    %247 = vmatpush.msra.mxu0 %v246
    %v248 = vand.u32 %v66, 4294901760
    %249 = vmatmul.f32.gmra.mxu0 %v248
    %v250 = vpop.f32.mrf.mxu0
    %v251 = vadd.f32 %v226, %v250
    %252 = vdwg.mxu0
    %253 = vmatpush.msra.mxu0 0.0
    %254 = vmatpush.msra.mxu0 0.0
    %255 = vmatpush.msra.mxu0 0.0
    %256 = vmatpush.msra.mxu0 0.0
    %257 = vmatpush.msra.mxu0 0.0
    %258 = vmatpush.msra.mxu0 0.0
    %259 = vmatpush.msra.mxu0 0.0
    %260 = vmatpush.msra.mxu0 0.0
    %261 = vmatpush.msra.mxu0 0.0
    %262 = vmatpush.msra.mxu0 0.0
    %263 = vmatpush.msra.mxu0 0.0
    %264 = vmatpush.msra.mxu0 0.0
    %v265 = vand.u32 %v57, 4294901760
    %266 = vmatpush.msra.mxu0 %v265
    %v267 = vand.u32 %v55, 4294901760
    %268 = vmatpush.msra.mxu0 %v267
    %v269 = vand.u32 %v53, 4294901760
    %270 = vmatpush.msra.mxu0 %v269
    %v271 = vand.u32 %v51, 4294901760
    %272 = vmatpush.msra.mxu0 %v271
    %v273 = vand.u32 %v66, 4294901760
    %v274 = vsub.f32 %v66, %v273
    %v275 = vand.u32 %v274, 4294901760
    %v276 = vsub.f32 %v274, %v275
    %v277 = vand.u32 %v276, 4294901760
    %278 = vmatmul.f32.gmra.mxu0 %v277
    %v279 = vpop.f32.mrf.mxu0
    %v280 = vadd.f32 %v61, %v279
    %281 = vdwg.mxu0
    %282 = vmatpush.msra.mxu0 0.0
    %283 = vmatpush.msra.mxu0 0.0
    %284 = vmatpush.msra.mxu0 0.0
    %285 = vmatpush.msra.mxu0 0.0
    %286 = vmatpush.msra.mxu0 0.0
    %287 = vmatpush.msra.mxu0 0.0
    %288 = vmatpush.msra.mxu0 0.0
    %289 = vmatpush.msra.mxu0 0.0
    %290 = vmatpush.msra.mxu0 0.0
    %291 = vmatpush.msra.mxu0 0.0
    %292 = vmatpush.msra.mxu0 0.0
    %293 = vmatpush.msra.mxu0 0.0
    %v294 = vand.u32 %v57, 4294901760
    %v295 = vsub.f32 %v57, %v294
    %v296 = vand.u32 %v295, 4294901760
    %v297 = vsub.f32 %v295, %v296
    %v298 = vand.u32 %v297, 4294901760
    %299 = vmatpush.msra.mxu0 %v298
    %v300 = vand.u32 %v55, 4294901760
    %v301 = vsub.f32 %v55, %v300
    %v302 = vand.u32 %v301, 4294901760
    %v303 = vsub.f32 %v301, %v302
    %v304 = vand.u32 %v303, 4294901760
    %305 = vmatpush.msra.mxu0 %v304
    %v306 = vand.u32 %v53, 4294901760
    %v307 = vsub.f32 %v53, %v306
    %v308 = vand.u32 %v307, 4294901760
    %v309 = vsub.f32 %v307, %v308
    %v310 = vand.u32 %v309, 4294901760
    %311 = vmatpush.msra.mxu0 %v310
    %v312 = vand.u32 %v51, 4294901760
    %v313 = vsub.f32 %v51, %v312
    %v314 = vand.u32 %v313, 4294901760
    %v315 = vsub.f32 %v313, %v314
    %v316 = vand.u32 %v315, 4294901760
    %317 = vmatpush.msra.mxu0 %v316
    %v318 = vand.u32 %v66, 4294901760
    %319 = vmatmul.f32.gmra.mxu0 %v318
    %v320 = vpop.f32.mrf.mxu0
    %v321 = vadd.f32 %v280, %v320
    %322 = vdwg.mxu0
    %323 = vmatpush.msra.mxu0 0.0
    %324 = vmatpush.msra.mxu0 0.0
    %325 = vmatpush.msra.mxu0 0.0
    %326 = vmatpush.msra.mxu0 0.0
    %327 = vmatpush.msra.mxu0 0.0
    %328 = vmatpush.msra.mxu0 0.0
    %329 = vmatpush.msra.mxu0 0.0
    %330 = vmatpush.msra.mxu0 0.0
    %331 = vmatpush.msra.mxu0 0.0
    %332 = vmatpush.msra.mxu0 0.0
    %333 = vmatpush.msra.mxu0 0.0
    %334 = vmatpush.msra.mxu0 0.0
    %v335 = vand.u32 %v57, 4294901760
    %v336 = vsub.f32 %v57, %v335
    %337 = vmatpush.msra.mxu0 %v336
    %v338 = vand.u32 %v55, 4294901760
    %v339 = vsub.f32 %v55, %v338
    %340 = vmatpush.msra.mxu0 %v339
    %v341 = vand.u32 %v53, 4294901760
    %v342 = vsub.f32 %v53, %v341
    %343 = vmatpush.msra.mxu0 %v342
    %v344 = vand.u32 %v51, 4294901760
    %v345 = vsub.f32 %v51, %v344
    %346 = vmatpush.msra.mxu0 %v345
    %v347 = vand.u32 %v66, 4294901760
    %v348 = vsub.f32 %v66, %v347
    %349 = vmatmul.f32.gmra.mxu0 %v348
    %v350 = vpop.f32.mrf.mxu0
    %v351 = vadd.f32 %v321, %v350
    %352 = vdwg.mxu0
    %353 = vmatpush.msra.mxu0 0.0
    %354 = vmatpush.msra.mxu0 0.0
    %355 = vmatpush.msra.mxu0 0.0
    %356 = vmatpush.msra.mxu0 0.0
    %357 = vmatpush.msra.mxu0 0.0
    %358 = vmatpush.msra.mxu0 0.0
    %359 = vmatpush.msra.mxu0 0.0
    %360 = vmatpush.msra.mxu0 0.0
    %361 = vmatpush.msra.mxu0 0.0
    %362 = vmatpush.msra.mxu0 0.0
    %363 = vmatpush.msra.mxu0 0.0
    %364 = vmatpush.msra.mxu0 0.0
    %v365 = vand.u32 %v57, 4294901760
    %366 = vmatpush.msra.mxu0 %v365
    %v367 = vand.u32 %v55, 4294901760
    %368 = vmatpush.msra.mxu0 %v367
    %v369 = vand.u32 %v53, 4294901760
    %370 = vmatpush.msra.mxu0 %v369
    %v371 = vand.u32 %v51, 4294901760
    %372 = vmatpush.msra.mxu0 %v371
    %v373 = vand.u32 %v66, 4294901760
    %v374 = vsub.f32 %v66, %v373
    %v375 = vand.u32 %v374, 4294901760
    %376 = vmatmul.f32.gmra.mxu0 %v375
    %v377 = vpop.f32.mrf.mxu0
    %v378 = vadd.f32 %v351, %v377
    %379 = vdwg.mxu0
    %380 = vmatpush.msra.mxu0 0.0
    %381 = vmatpush.msra.mxu0 0.0
    %382 = vmatpush.msra.mxu0 0.0
    %383 = vmatpush.msra.mxu0 0.0
    %384 = vmatpush.msra.mxu0 0.0
    %385 = vmatpush.msra.mxu0 0.0
    %386 = vmatpush.msra.mxu0 0.0
    %387 = vmatpush.msra.mxu0 0.0
    %388 = vmatpush.msra.mxu0 0.0
    %389 = vmatpush.msra.mxu0 0.0
    %390 = vmatpush.msra.mxu0 0.0
    %391 = vmatpush.msra.mxu0 0.0
    %v392 = vand.u32 %v57, 4294901760
    %v393 = vsub.f32 %v57, %v392
    %v394 = vand.u32 %v393, 4294901760
    %395 = vmatpush.msra.mxu0 %v394
    %v396 = vand.u32 %v55, 4294901760
    %v397 = vsub.f32 %v55, %v396
    %v398 = vand.u32 %v397, 4294901760
    %399 = vmatpush.msra.mxu0 %v398
    %v400 = vand.u32 %v53, 4294901760
    %v401 = vsub.f32 %v53, %v400
    %v402 = vand.u32 %v401, 4294901760
    %403 = vmatpush.msra.mxu0 %v402
    %v404 = vand.u32 %v51, 4294901760
    %v405 = vsub.f32 %v51, %v404
    %v406 = vand.u32 %v405, 4294901760
    %407 = vmatpush.msra.mxu0 %v406
    %v408 = vand.u32 %v66, 4294901760
    %409 = vmatmul.f32.gmra.mxu0 %v408
    %v410 = vpop.f32.mrf.mxu0
    %v411 = vadd.f32 %v378, %v410
    %412 = vdwg.mxu0
    %413 = vmatpush.msra.mxu0 0.0
    %414 = vmatpush.msra.mxu0 0.0
    %415 = vmatpush.msra.mxu0 0.0
    %416 = vmatpush.msra.mxu0 0.0
    %417 = vmatpush.msra.mxu0 0.0
    %418 = vmatpush.msra.mxu0 0.0
    %419 = vmatpush.msra.mxu0 0.0
    %420 = vmatpush.msra.mxu0 0.0
    %421 = vmatpush.msra.mxu0 0.0
    %422 = vmatpush.msra.mxu0 0.0
    %423 = vmatpush.msra.mxu0 0.0
    %424 = vmatpush.msra.mxu0 0.0
    %v425 = vand.u32 %v57, 4294901760
    %426 = vmatpush.msra.mxu0 %v425
    %v427 = vand.u32 %v55, 4294901760
    %428 = vmatpush.msra.mxu0 %v427
    %v429 = vand.u32 %v53, 4294901760
    %430 = vmatpush.msra.mxu0 %v429
    %v431 = vand.u32 %v51, 4294901760
    %432 = vmatpush.msra.mxu0 %v431
    %v433 = vand.u32 %v66, 4294901760
    %434 = vmatmul.f32.gmra.mxu0 %v433
    %v435 = vpop.f32.mrf.mxu0
    %v436 = vadd.f32 %v411, %v435
    %437 = vdwg.mxu0
    %v438 = vmax.f32 %v251, 0.0
    %v439 = vmax.f32 %v436, 0.0
    %v440 = vld [vmem:[#allocation2] sm:$0xff]
    %v441 = vld [vmem:[#allocation2 + $0x8] sm:$0xff]
    %v442 = vld [vmem:[#allocation2 + $0x10] sm:$0xff]
    %v443 = vld [vmem:[#allocation2 + $0x18] sm:$0xff]
    %v444 = vld [vmem:[#allocation2 + $0x20] sm:$0xff]
    %v445 = vld [vmem:[#allocation2 + $0x28] sm:$0xff]
    %v446 = vld [vmem:[#allocation2 + $0x30] sm:$0xff]
    %v447 = vld [vmem:[#allocation2 + $0x38] sm:$0xff]
    %v448 = vld [vmem:[#allocation2 + $0x40] sm:$0xff]
    %v449 = vld [vmem:[#allocation2 + $0x48] sm:$0xff]
    %v450 = vld [vmem:[#allocation2 + $0x50] sm:$0xff]
    %v451 = vld [vmem:[#allocation2 + $0x58] sm:$0xff]
    %v452 = vld [vmem:[#allocation2 + $0x60] sm:$0xff]
    %v453 = vld [vmem:[#allocation2 + $0x68] sm:$0xff]
    %v454 = vld [vmem:[#allocation2 + $0x70] sm:$0xff]
    %v455 = vld [vmem:[#allocation2 + $0x78] sm:$0xff]
    %v456 = vld [vmem:[#allocation2 + $0x80] sm:$0xff]
    %v457 = vld [vmem:[#allocation2 + $0x88] sm:$0xff]
    %v458 = vld [vmem:[#allocation2 + $0x90] sm:$0xff]
    %v459 = vld [vmem:[#allocation2 + $0x98] sm:$0xff]
    %v460 = vld [vmem:[#allocation2 + $0xa0] sm:$0xff]
    %v461 = vld [vmem:[#allocation2 + $0xa8] sm:$0xff]
    %v462 = vld [vmem:[#allocation2 + $0xb0] sm:$0xff]
    %v463 = vld [vmem:[#allocation2 + $0xb8] sm:$0xff]
    %v464 = vld [vmem:[#allocation2 + $0xc0] sm:$0xff]
    %v465 = vld [vmem:[#allocation2 + $0xc8] sm:$0xff]
    %v466 = vld [vmem:[#allocation2 + $0xd0] sm:$0xff]
    %v467 = vld [vmem:[#allocation2 + $0xd8] sm:$0xff]
    %v468 = vld [vmem:[#allocation2 + $0xe0] sm:$0xff]
    %v469 = vld [vmem:[#allocation2 + $0xe8] sm:$0xff]
    %v470 = vld [vmem:[#allocation2 + $0xf0] sm:$0xff]
    %v471 = vld [vmem:[#allocation2 + $0xf8] sm:$0xff]
    %v472 = vld [vmem:[%s4] sm:$0x1]
    %v474 = vperm.slane %v472, 0
    %v476 = vand.u32 %v455, 4294901760
    %477 = vmatpush.msra.mxu0 %v476
    %v478 = vand.u32 %v454, 4294901760
    %479 = vmatpush.msra.mxu0 %v478
    %v480 = vand.u32 %v453, 4294901760
    %481 = vmatpush.msra.mxu0 %v480
    %v482 = vand.u32 %v452, 4294901760
    %483 = vmatpush.msra.mxu0 %v482
    %v484 = vand.u32 %v451, 4294901760
    %485 = vmatpush.msra.mxu0 %v484
    %v486 = vand.u32 %v450, 4294901760
    %487 = vmatpush.msra.mxu0 %v486
    %v488 = vand.u32 %v449, 4294901760
    %489 = vmatpush.msra.mxu0 %v488
    %v490 = vand.u32 %v448, 4294901760
    %491 = vmatpush.msra.mxu0 %v490
    %v492 = vand.u32 %v447, 4294901760
    %493 = vmatpush.msra.mxu0 %v492
    %v494 = vand.u32 %v446, 4294901760
    %495 = vmatpush.msra.mxu0 %v494
    %v496 = vand.u32 %v445, 4294901760
    %497 = vmatpush.msra.mxu0 %v496
    %v498 = vand.u32 %v444, 4294901760
    %499 = vmatpush.msra.mxu0 %v498
    %v500 = vand.u32 %v443, 4294901760
    %501 = vmatpush.msra.mxu0 %v500
    %v502 = vand.u32 %v442, 4294901760
    %503 = vmatpush.msra.mxu0 %v502
    %v504 = vand.u32 %v441, 4294901760
    %505 = vmatpush.msra.mxu0 %v504
    %v506 = vand.u32 %v440, 4294901760
    %507 = vmatpush.msra.mxu0 %v506
    %v508 = vand.u32 %v438, 4294901760
    %v509 = vsub.f32 %v438, %v508
    %v510 = vand.u32 %v509, 4294901760
    %v511 = vsub.f32 %v509, %v510
    %v512 = vand.u32 %v511, 4294901760
    %513 = vmatmul.f32.gmra.mxu0 %v512
    %v514 = vpop.f32.mrf.mxu0
    %v515 = vadd.f32 %v474, %v514
    %516 = vdwg.mxu0
    %v517 = vand.u32 %v455, 4294901760
    %v518 = vsub.f32 %v455, %v517
    %v519 = vand.u32 %v518, 4294901760
    %v520 = vsub.f32 %v518, %v519
    %v521 = vand.u32 %v520, 4294901760
    %522 = vmatpush.msra.mxu0 %v521
    %v523 = vand.u32 %v454, 4294901760
    %v524 = vsub.f32 %v454, %v523
    %v525 = vand.u32 %v524, 4294901760
    %v526 = vsub.f32 %v524, %v525
    %v527 = vand.u32 %v526, 4294901760
    %528 = vmatpush.msra.mxu0 %v527
    %v529 = vand.u32 %v453, 4294901760
    %v530 = vsub.f32 %v453, %v529
    %v531 = vand.u32 %v530, 4294901760
    %v532 = vsub.f32 %v530, %v531
    %v533 = vand.u32 %v532, 4294901760
    %534 = vmatpush.msra.mxu0 %v533
    %v535 = vand.u32 %v452, 4294901760
    %v536 = vsub.f32 %v452, %v535
    %v537 = vand.u32 %v536, 4294901760
    %v538 = vsub.f32 %v536, %v537
    %v539 = vand.u32 %v538, 4294901760
    %540 = vmatpush.msra.mxu0 %v539
    %v541 = vand.u32 %v451, 4294901760
    %v542 = vsub.f32 %v451, %v541
    %v543 = vand.u32 %v542, 4294901760
    %v544 = vsub.f32 %v542, %v543
    %v545 = vand.u32 %v544, 4294901760
    %546 = vmatpush.msra.mxu0 %v545
    %v547 = vand.u32 %v450, 4294901760
    %v548 = vsub.f32 %v450, %v547
    %v549 = vand.u32 %v548, 4294901760
    %v550 = vsub.f32 %v548, %v549
    %v551 = vand.u32 %v550, 4294901760
    %552 = vmatpush.msra.mxu0 %v551
    %v553 = vand.u32 %v449, 4294901760
    %v554 = vsub.f32 %v449, %v553
    %v555 = vand.u32 %v554, 4294901760
    %v556 = vsub.f32 %v554, %v555
    %v557 = vand.u32 %v556, 4294901760
    %558 = vmatpush.msra.mxu0 %v557
    %v559 = vand.u32 %v448, 4294901760
    %v560 = vsub.f32 %v448, %v559
    %v561 = vand.u32 %v560, 4294901760
    %v562 = vsub.f32 %v560, %v561
    %v563 = vand.u32 %v562, 4294901760
    %564 = vmatpush.msra.mxu0 %v563
    %v565 = vand.u32 %v447, 4294901760
    %v566 = vsub.f32 %v447, %v565
    %v567 = vand.u32 %v566, 4294901760
    %v568 = vsub.f32 %v566, %v567
    %v569 = vand.u32 %v568, 4294901760
    %570 = vmatpush.msra.mxu0 %v569
    %v571 = vand.u32 %v446, 4294901760
    %v572 = vsub.f32 %v446, %v571
    %v573 = vand.u32 %v572, 4294901760
    %v574 = vsub.f32 %v572, %v573
    %v575 = vand.u32 %v574, 4294901760
    %576 = vmatpush.msra.mxu0 %v575
    %v577 = vand.u32 %v445, 4294901760
    %v578 = vsub.f32 %v445, %v577
    %v579 = vand.u32 %v578, 4294901760
    %v580 = vsub.f32 %v578, %v579
    %v581 = vand.u32 %v580, 4294901760
    %582 = vmatpush.msra.mxu0 %v581
    %v583 = vand.u32 %v444, 4294901760
    %v584 = vsub.f32 %v444, %v583
    %v585 = vand.u32 %v584, 4294901760
    %v586 = vsub.f32 %v584, %v585
    %v587 = vand.u32 %v586, 4294901760
    %588 = vmatpush.msra.mxu0 %v587
    %v589 = vand.u32 %v443, 4294901760
    %v590 = vsub.f32 %v443, %v589
    %v591 = vand.u32 %v590, 4294901760
    %v592 = vsub.f32 %v590, %v591
    %v593 = vand.u32 %v592, 4294901760
    %594 = vmatpush.msra.mxu0 %v593
    %v595 = vand.u32 %v442, 4294901760
    %v596 = vsub.f32 %v442, %v595
    %v597 = vand.u32 %v596, 4294901760
    %v598 = vsub.f32 %v596, %v597
    %v599 = vand.u32 %v598, 4294901760
    %600 = vmatpush.msra.mxu0 %v599
    %v601 = vand.u32 %v441, 4294901760
    %v602 = vsub.f32 %v441, %v601
    %v603 = vand.u32 %v602, 4294901760
    %v604 = vsub.f32 %v602, %v603
    %v605 = vand.u32 %v604, 4294901760
    %606 = vmatpush.msra.mxu0 %v605
    %v607 = vand.u32 %v440, 4294901760
    %v608 = vsub.f32 %v440, %v607
    %v609 = vand.u32 %v608, 4294901760
    %v610 = vsub.f32 %v608, %v609
    %v611 = vand.u32 %v610, 4294901760
    %612 = vmatpush.msra.mxu0 %v611
    %v613 = vand.u32 %v438, 4294901760
    %614 = vmatmul.f32.gmra.mxu0 %v613
    %v615 = vpop.f32.mrf.mxu0
    %v616 = vadd.f32 %v515, %v615
    %617 = vdwg.mxu0
    %v618 = vand.u32 %v455, 4294901760
    %v619 = vsub.f32 %v455, %v618
    %620 = vmatpush.msra.mxu0 %v619
    %v621 = vand.u32 %v454, 4294901760
    %v622 = vsub.f32 %v454, %v621
    %623 = vmatpush.msra.mxu0 %v622
    %v624 = vand.u32 %v453, 4294901760
    %v625 = vsub.f32 %v453, %v624
    %626 = vmatpush.msra.mxu0 %v625
    %v627 = vand.u32 %v452, 4294901760
    %v628 = vsub.f32 %v452, %v627
    %629 = vmatpush.msra.mxu0 %v628
    %v630 = vand.u32 %v451, 4294901760
    %v631 = vsub.f32 %v451, %v630
    %632 = vmatpush.msra.mxu0 %v631
    %v633 = vand.u32 %v450, 4294901760
    %v634 = vsub.f32 %v450, %v633
    %635 = vmatpush.msra.mxu0 %v634
    %v636 = vand.u32 %v449, 4294901760
    %v637 = vsub.f32 %v449, %v636
    %638 = vmatpush.msra.mxu0 %v637
    %v639 = vand.u32 %v448, 4294901760
    %v640 = vsub.f32 %v448, %v639
    %641 = vmatpush.msra.mxu0 %v640
    %v642 = vand.u32 %v447, 4294901760
    %v643 = vsub.f32 %v447, %v642
    %644 = vmatpush.msra.mxu0 %v643
    %v645 = vand.u32 %v446, 4294901760
    %v646 = vsub.f32 %v446, %v645
    %647 = vmatpush.msra.mxu0 %v646
    %v648 = vand.u32 %v445, 4294901760
    %v649 = vsub.f32 %v445, %v648
    %650 = vmatpush.msra.mxu0 %v649
    %v651 = vand.u32 %v444, 4294901760
    %v652 = vsub.f32 %v444, %v651
    %653 = vmatpush.msra.mxu0 %v652
    %v654 = vand.u32 %v443, 4294901760
    %v655 = vsub.f32 %v443, %v654
    %656 = vmatpush.msra.mxu0 %v655
    %v657 = vand.u32 %v442, 4294901760
    %v658 = vsub.f32 %v442, %v657
    %659 = vmatpush.msra.mxu0 %v658
    %v660 = vand.u32 %v441, 4294901760
    %v661 = vsub.f32 %v441, %v660
    %662 = vmatpush.msra.mxu0 %v661
    %v663 = vand.u32 %v440, 4294901760
    %v664 = vsub.f32 %v440, %v663
    %665 = vmatpush.msra.mxu0 %v664
    %v666 = vand.u32 %v438, 4294901760
    %v667 = vsub.f32 %v438, %v666
    %668 = vmatmul.f32.gmra.mxu0 %v667
    %v669 = vpop.f32.mrf.mxu0
    %v670 = vadd.f32 %v616, %v669
    %671 = vdwg.mxu0
    %v672 = vand.u32 %v455, 4294901760
    %673 = vmatpush.msra.mxu0 %v672
    %v674 = vand.u32 %v454, 4294901760
    %675 = vmatpush.msra.mxu0 %v674
    %v676 = vand.u32 %v453, 4294901760
    %677 = vmatpush.msra.mxu0 %v676
    %v678 = vand.u32 %v452, 4294901760
    %679 = vmatpush.msra.mxu0 %v678
    %v680 = vand.u32 %v451, 4294901760
    %681 = vmatpush.msra.mxu0 %v680
    %v682 = vand.u32 %v450, 4294901760
    %683 = vmatpush.msra.mxu0 %v682
    %v684 = vand.u32 %v449, 4294901760
    %685 = vmatpush.msra.mxu0 %v684
    %v686 = vand.u32 %v448, 4294901760
    %687 = vmatpush.msra.mxu0 %v686
    %v688 = vand.u32 %v447, 4294901760
    %689 = vmatpush.msra.mxu0 %v688
    %v690 = vand.u32 %v446, 4294901760
    %691 = vmatpush.msra.mxu0 %v690
    %v692 = vand.u32 %v445, 4294901760
    %693 = vmatpush.msra.mxu0 %v692
    %v694 = vand.u32 %v444, 4294901760
    %695 = vmatpush.msra.mxu0 %v694
    %v696 = vand.u32 %v443, 4294901760
    %697 = vmatpush.msra.mxu0 %v696
    %v698 = vand.u32 %v442, 4294901760
    %699 = vmatpush.msra.mxu0 %v698
    %v700 = vand.u32 %v441, 4294901760
    %701 = vmatpush.msra.mxu0 %v700
    %v702 = vand.u32 %v440, 4294901760
    %703 = vmatpush.msra.mxu0 %v702
    %v704 = vand.u32 %v438, 4294901760
    %v705 = vsub.f32 %v438, %v704
    %v706 = vand.u32 %v705, 4294901760
    %707 = vmatmul.f32.gmra.mxu0 %v706
    %v708 = vpop.f32.mrf.mxu0
    %v709 = vadd.f32 %v670, %v708
    %710 = vdwg.mxu0
    %v711 = vand.u32 %v455, 4294901760
    %v712 = vsub.f32 %v455, %v711
    %v713 = vand.u32 %v712, 4294901760
    %714 = vmatpush.msra.mxu0 %v713
    %v715 = vand.u32 %v454, 4294901760
    %v716 = vsub.f32 %v454, %v715
    %v717 = vand.u32 %v716, 4294901760
    %718 = vmatpush.msra.mxu0 %v717
    %v719 = vand.u32 %v453, 4294901760
    %v720 = vsub.f32 %v453, %v719
    %v721 = vand.u32 %v720, 4294901760
    %722 = vmatpush.msra.mxu0 %v721
    %v723 = vand.u32 %v452, 4294901760
    %v724 = vsub.f32 %v452, %v723
    %v725 = vand.u32 %v724, 4294901760
    %726 = vmatpush.msra.mxu0 %v725
    %v727 = vand.u32 %v451, 4294901760
    %v728 = vsub.f32 %v451, %v727
    %v729 = vand.u32 %v728, 4294901760
    %730 = vmatpush.msra.mxu0 %v729
    %v731 = vand.u32 %v450, 4294901760
    %v732 = vsub.f32 %v450, %v731
    %v733 = vand.u32 %v732, 4294901760
    %734 = vmatpush.msra.mxu0 %v733
    %v735 = vand.u32 %v449, 4294901760
    %v736 = vsub.f32 %v449, %v735
    %v737 = vand.u32 %v736, 4294901760
    %738 = vmatpush.msra.mxu0 %v737
    %v739 = vand.u32 %v448, 4294901760
    %v740 = vsub.f32 %v448, %v739
    %v741 = vand.u32 %v740, 4294901760
    %742 = vmatpush.msra.mxu0 %v741
    %v743 = vand.u32 %v447, 4294901760
    %v744 = vsub.f32 %v447, %v743
    %v745 = vand.u32 %v744, 4294901760
    %746 = vmatpush.msra.mxu0 %v745
    %v747 = vand.u32 %v446, 4294901760
    %v748 = vsub.f32 %v446, %v747
    %v749 = vand.u32 %v748, 4294901760
    %750 = vmatpush.msra.mxu0 %v749
    %v751 = vand.u32 %v445, 4294901760
    %v752 = vsub.f32 %v445, %v751
    %v753 = vand.u32 %v752, 4294901760
    %754 = vmatpush.msra.mxu0 %v753
    %v755 = vand.u32 %v444, 4294901760
    %v756 = vsub.f32 %v444, %v755
    %v757 = vand.u32 %v756, 4294901760
    %758 = vmatpush.msra.mxu0 %v757
    %v759 = vand.u32 %v443, 4294901760
    %v760 = vsub.f32 %v443, %v759
    %v761 = vand.u32 %v760, 4294901760
    %762 = vmatpush.msra.mxu0 %v761
    %v763 = vand.u32 %v442, 4294901760
    %v764 = vsub.f32 %v442, %v763
    %v765 = vand.u32 %v764, 4294901760
    %766 = vmatpush.msra.mxu0 %v765
    %v767 = vand.u32 %v441, 4294901760
    %v768 = vsub.f32 %v441, %v767
    %v769 = vand.u32 %v768, 4294901760
    %770 = vmatpush.msra.mxu0 %v769
    %v771 = vand.u32 %v440, 4294901760
    %v772 = vsub.f32 %v440, %v771
    %v773 = vand.u32 %v772, 4294901760
    %774 = vmatpush.msra.mxu0 %v773
    %v775 = vand.u32 %v438, 4294901760
    %776 = vmatmul.f32.gmra.mxu0 %v775
    %v777 = vpop.f32.mrf.mxu0
    %v778 = vadd.f32 %v709, %v777
    %779 = vdwg.mxu0
    %v780 = vand.u32 %v455, 4294901760
    %781 = vmatpush.msra.mxu0 %v780
    %v782 = vand.u32 %v454, 4294901760
    %783 = vmatpush.msra.mxu0 %v782
    %v784 = vand.u32 %v453, 4294901760
    %785 = vmatpush.msra.mxu0 %v784
    %v786 = vand.u32 %v452, 4294901760
    %787 = vmatpush.msra.mxu0 %v786
    %v788 = vand.u32 %v451, 4294901760
    %789 = vmatpush.msra.mxu0 %v788
    %v790 = vand.u32 %v450, 4294901760
    %791 = vmatpush.msra.mxu0 %v790
    %v792 = vand.u32 %v449, 4294901760
    %793 = vmatpush.msra.mxu0 %v792
    %v794 = vand.u32 %v448, 4294901760
    %795 = vmatpush.msra.mxu0 %v794
    %v796 = vand.u32 %v447, 4294901760
    %797 = vmatpush.msra.mxu0 %v796
    %v798 = vand.u32 %v446, 4294901760
    %799 = vmatpush.msra.mxu0 %v798
    %v800 = vand.u32 %v445, 4294901760
    %801 = vmatpush.msra.mxu0 %v800
    %v802 = vand.u32 %v444, 4294901760
    %803 = vmatpush.msra.mxu0 %v802
    %v804 = vand.u32 %v443, 4294901760
    %805 = vmatpush.msra.mxu0 %v804
    %v806 = vand.u32 %v442, 4294901760
    %807 = vmatpush.msra.mxu0 %v806
    %v808 = vand.u32 %v441, 4294901760
    %809 = vmatpush.msra.mxu0 %v808
    %v810 = vand.u32 %v440, 4294901760
    %811 = vmatpush.msra.mxu0 %v810
    %v812 = vand.u32 %v438, 4294901760
    %813 = vmatmul.f32.gmra.mxu0 %v812
    %v814 = vpop.f32.mrf.mxu0
    %v815 = vadd.f32 %v778, %v814
    %816 = vdwg.mxu0
    %v817 = vand.u32 %v471, 4294901760
    %818 = vmatpush.msra.mxu0 %v817
    %v819 = vand.u32 %v470, 4294901760
    %820 = vmatpush.msra.mxu0 %v819
    %v821 = vand.u32 %v469, 4294901760
    %822 = vmatpush.msra.mxu0 %v821
    %v823 = vand.u32 %v468, 4294901760
    %824 = vmatpush.msra.mxu0 %v823
    %v825 = vand.u32 %v467, 4294901760
    %826 = vmatpush.msra.mxu0 %v825
    %v827 = vand.u32 %v466, 4294901760
    %828 = vmatpush.msra.mxu0 %v827
    %v829 = vand.u32 %v465, 4294901760
    %830 = vmatpush.msra.mxu0 %v829
    %v831 = vand.u32 %v464, 4294901760
    %832 = vmatpush.msra.mxu0 %v831
    %v833 = vand.u32 %v463, 4294901760
    %834 = vmatpush.msra.mxu0 %v833
    %v835 = vand.u32 %v462, 4294901760
    %836 = vmatpush.msra.mxu0 %v835
    %v837 = vand.u32 %v461, 4294901760
    %838 = vmatpush.msra.mxu0 %v837
    %v839 = vand.u32 %v460, 4294901760
    %840 = vmatpush.msra.mxu0 %v839
    %v841 = vand.u32 %v459, 4294901760
    %842 = vmatpush.msra.mxu0 %v841
    %v843 = vand.u32 %v458, 4294901760
    %844 = vmatpush.msra.mxu0 %v843
    %v845 = vand.u32 %v457, 4294901760
    %846 = vmatpush.msra.mxu0 %v845
    %v847 = vand.u32 %v456, 4294901760
    %848 = vmatpush.msra.mxu0 %v847
    %v849 = vand.u32 %v439, 4294901760
    %v850 = vsub.f32 %v439, %v849
    %v851 = vand.u32 %v850, 4294901760
    %v852 = vsub.f32 %v850, %v851
    %v853 = vand.u32 %v852, 4294901760
    %854 = vmatmul.f32.gmra.mxu0 %v853
    %v855 = vpop.f32.mrf.mxu0
    %v856 = vadd.f32 %v815, %v855
    %857 = vdwg.mxu0
    %v858 = vand.u32 %v471, 4294901760
    %v859 = vsub.f32 %v471, %v858
    %v860 = vand.u32 %v859, 4294901760
    %v861 = vsub.f32 %v859, %v860
    %v862 = vand.u32 %v861, 4294901760
    %863 = vmatpush.msra.mxu0 %v862
    %v864 = vand.u32 %v470, 4294901760
    %v865 = vsub.f32 %v470, %v864
    %v866 = vand.u32 %v865, 4294901760
    %v867 = vsub.f32 %v865, %v866
    %v868 = vand.u32 %v867, 4294901760
    %869 = vmatpush.msra.mxu0 %v868
    %v870 = vand.u32 %v469, 4294901760
    %v871 = vsub.f32 %v469, %v870
    %v872 = vand.u32 %v871, 4294901760
    %v873 = vsub.f32 %v871, %v872
    %v874 = vand.u32 %v873, 4294901760
    %875 = vmatpush.msra.mxu0 %v874
    %v876 = vand.u32 %v468, 4294901760
    %v877 = vsub.f32 %v468, %v876
    %v878 = vand.u32 %v877, 4294901760
    %v879 = vsub.f32 %v877, %v878
    %v880 = vand.u32 %v879, 4294901760
    %881 = vmatpush.msra.mxu0 %v880
    %v882 = vand.u32 %v467, 4294901760
    %v883 = vsub.f32 %v467, %v882
    %v884 = vand.u32 %v883, 4294901760
    %v885 = vsub.f32 %v883, %v884
    %v886 = vand.u32 %v885, 4294901760
    %887 = vmatpush.msra.mxu0 %v886
    %v888 = vand.u32 %v466, 4294901760
    %v889 = vsub.f32 %v466, %v888
    %v890 = vand.u32 %v889, 4294901760
    %v891 = vsub.f32 %v889, %v890
    %v892 = vand.u32 %v891, 4294901760
    %893 = vmatpush.msra.mxu0 %v892
    %v894 = vand.u32 %v465, 4294901760
    %v895 = vsub.f32 %v465, %v894
    %v896 = vand.u32 %v895, 4294901760
    %v897 = vsub.f32 %v895, %v896
    %v898 = vand.u32 %v897, 4294901760
    %899 = vmatpush.msra.mxu0 %v898
    %v900 = vand.u32 %v464, 4294901760
    %v901 = vsub.f32 %v464, %v900
    %v902 = vand.u32 %v901, 4294901760
    %v903 = vsub.f32 %v901, %v902
    %v904 = vand.u32 %v903, 4294901760
    %905 = vmatpush.msra.mxu0 %v904
    %v906 = vand.u32 %v463, 4294901760
    %v907 = vsub.f32 %v463, %v906
    %v908 = vand.u32 %v907, 4294901760
    %v909 = vsub.f32 %v907, %v908
    %v910 = vand.u32 %v909, 4294901760
    %911 = vmatpush.msra.mxu0 %v910
    %v912 = vand.u32 %v462, 4294901760
    %v913 = vsub.f32 %v462, %v912
    %v914 = vand.u32 %v913, 4294901760
    %v915 = vsub.f32 %v913, %v914
    %v916 = vand.u32 %v915, 4294901760
    %917 = vmatpush.msra.mxu0 %v916
    %v918 = vand.u32 %v461, 4294901760
    %v919 = vsub.f32 %v461, %v918
    %v920 = vand.u32 %v919, 4294901760
    %v921 = vsub.f32 %v919, %v920
    %v922 = vand.u32 %v921, 4294901760
    %923 = vmatpush.msra.mxu0 %v922
    %v924 = vand.u32 %v460, 4294901760
    %v925 = vsub.f32 %v460, %v924
    %v926 = vand.u32 %v925, 4294901760
    %v927 = vsub.f32 %v925, %v926
    %v928 = vand.u32 %v927, 4294901760
    %929 = vmatpush.msra.mxu0 %v928
    %v930 = vand.u32 %v459, 4294901760
    %v931 = vsub.f32 %v459, %v930
    %v932 = vand.u32 %v931, 4294901760
    %v933 = vsub.f32 %v931, %v932
    %v934 = vand.u32 %v933, 4294901760
    %935 = vmatpush.msra.mxu0 %v934
    %v936 = vand.u32 %v458, 4294901760
    %v937 = vsub.f32 %v458, %v936
    %v938 = vand.u32 %v937, 4294901760
    %v939 = vsub.f32 %v937, %v938
    %v940 = vand.u32 %v939, 4294901760
    %941 = vmatpush.msra.mxu0 %v940
    %v942 = vand.u32 %v457, 4294901760
    %v943 = vsub.f32 %v457, %v942
    %v944 = vand.u32 %v943, 4294901760
    %v945 = vsub.f32 %v943, %v944
    %v946 = vand.u32 %v945, 4294901760
    %947 = vmatpush.msra.mxu0 %v946
    %v948 = vand.u32 %v456, 4294901760
    %v949 = vsub.f32 %v456, %v948
    %v950 = vand.u32 %v949, 4294901760
    %v951 = vsub.f32 %v949, %v950
    %v952 = vand.u32 %v951, 4294901760
    %953 = vmatpush.msra.mxu0 %v952
    %v954 = vand.u32 %v439, 4294901760
    %955 = vmatmul.f32.gmra.mxu0 %v954
    %v956 = vpop.f32.mrf.mxu0
    %v957 = vadd.f32 %v856, %v956
    %958 = vdwg.mxu0
    %v959 = vand.u32 %v471, 4294901760
    %v960 = vsub.f32 %v471, %v959
    %961 = vmatpush.msra.mxu0 %v960
    %v962 = vand.u32 %v470, 4294901760
    %v963 = vsub.f32 %v470, %v962
    %964 = vmatpush.msra.mxu0 %v963
    %v965 = vand.u32 %v469, 4294901760
    %v966 = vsub.f32 %v469, %v965
    %967 = vmatpush.msra.mxu0 %v966
    %v968 = vand.u32 %v468, 4294901760
    %v969 = vsub.f32 %v468, %v968
    %970 = vmatpush.msra.mxu0 %v969
    %v971 = vand.u32 %v467, 4294901760
    %v972 = vsub.f32 %v467, %v971
    %973 = vmatpush.msra.mxu0 %v972
    %v974 = vand.u32 %v466, 4294901760
    %v975 = vsub.f32 %v466, %v974
    %976 = vmatpush.msra.mxu0 %v975
    %v977 = vand.u32 %v465, 4294901760
    %v978 = vsub.f32 %v465, %v977
    %979 = vmatpush.msra.mxu0 %v978
    %v980 = vand.u32 %v464, 4294901760
    %v981 = vsub.f32 %v464, %v980
    %982 = vmatpush.msra.mxu0 %v981
    %v983 = vand.u32 %v463, 4294901760
    %v984 = vsub.f32 %v463, %v983
    %985 = vmatpush.msra.mxu0 %v984
    %v986 = vand.u32 %v462, 4294901760
    %v987 = vsub.f32 %v462, %v986
    %988 = vmatpush.msra.mxu0 %v987
    %v989 = vand.u32 %v461, 4294901760
    %v990 = vsub.f32 %v461, %v989
    %991 = vmatpush.msra.mxu0 %v990
    %v992 = vand.u32 %v460, 4294901760
    %v993 = vsub.f32 %v460, %v992
    %994 = vmatpush.msra.mxu0 %v993
    %v995 = vand.u32 %v459, 4294901760
    %v996 = vsub.f32 %v459, %v995
    %997 = vmatpush.msra.mxu0 %v996
    %v998 = vand.u32 %v458, 4294901760
    %v999 = vsub.f32 %v458, %v998
    %1000 = vmatpush.msra.mxu0 %v999
    %v1001 = vand.u32 %v457, 4294901760
    %v1002 = vsub.f32 %v457, %v1001
    %1003 = vmatpush.msra.mxu0 %v1002
    %v1004 = vand.u32 %v456, 4294901760
    %v1005 = vsub.f32 %v456, %v1004
    %1006 = vmatpush.msra.mxu0 %v1005
    %v1007 = vand.u32 %v439, 4294901760
    %v1008 = vsub.f32 %v439, %v1007
    %1009 = vmatmul.f32.gmra.mxu0 %v1008
    %v1010 = vpop.f32.mrf.mxu0
    %v1011 = vadd.f32 %v957, %v1010
    %1012 = vdwg.mxu0
    %v1013 = vand.u32 %v471, 4294901760
    %1014 = vmatpush.msra.mxu0 %v1013
    %v1015 = vand.u32 %v470, 4294901760
    %1016 = vmatpush.msra.mxu0 %v1015
    %v1017 = vand.u32 %v469, 4294901760
    %1018 = vmatpush.msra.mxu0 %v1017
    %v1019 = vand.u32 %v468, 4294901760
    %1020 = vmatpush.msra.mxu0 %v1019
    %v1021 = vand.u32 %v467, 4294901760
    %1022 = vmatpush.msra.mxu0 %v1021
    %v1023 = vand.u32 %v466, 4294901760
    %1024 = vmatpush.msra.mxu0 %v1023
    %v1025 = vand.u32 %v465, 4294901760
    %1026 = vmatpush.msra.mxu0 %v1025
    %v1027 = vand.u32 %v464, 4294901760
    %1028 = vmatpush.msra.mxu0 %v1027
    %v1029 = vand.u32 %v463, 4294901760
    %1030 = vmatpush.msra.mxu0 %v1029
    %v1031 = vand.u32 %v462, 4294901760
    %1032 = vmatpush.msra.mxu0 %v1031
    %v1033 = vand.u32 %v461, 4294901760
    %1034 = vmatpush.msra.mxu0 %v1033
    %v1035 = vand.u32 %v460, 4294901760
    %1036 = vmatpush.msra.mxu0 %v1035
    %v1037 = vand.u32 %v459, 4294901760
    %1038 = vmatpush.msra.mxu0 %v1037
    %v1039 = vand.u32 %v458, 4294901760
    %1040 = vmatpush.msra.mxu0 %v1039
    %v1041 = vand.u32 %v457, 4294901760
    %1042 = vmatpush.msra.mxu0 %v1041
    %v1043 = vand.u32 %v456, 4294901760
    %1044 = vmatpush.msra.mxu0 %v1043
    %v1045 = vand.u32 %v439, 4294901760
    %v1046 = vsub.f32 %v439, %v1045
    %v1047 = vand.u32 %v1046, 4294901760
    %1048 = vmatmul.f32.gmra.mxu0 %v1047
    %v1049 = vpop.f32.mrf.mxu0
    %v1050 = vadd.f32 %v1011, %v1049
    %1051 = vdwg.mxu0
    %v1052 = vand.u32 %v471, 4294901760
    %v1053 = vsub.f32 %v471, %v1052
    %v1054 = vand.u32 %v1053, 4294901760
    %1055 = vmatpush.msra.mxu0 %v1054
    %v1056 = vand.u32 %v470, 4294901760
    %v1057 = vsub.f32 %v470, %v1056
    %v1058 = vand.u32 %v1057, 4294901760
    %1059 = vmatpush.msra.mxu0 %v1058
    %v1060 = vand.u32 %v469, 4294901760
    %v1061 = vsub.f32 %v469, %v1060
    %v1062 = vand.u32 %v1061, 4294901760
    %1063 = vmatpush.msra.mxu0 %v1062
    %v1064 = vand.u32 %v468, 4294901760
    %v1065 = vsub.f32 %v468, %v1064
    %v1066 = vand.u32 %v1065, 4294901760
    %1067 = vmatpush.msra.mxu0 %v1066
    %v1068 = vand.u32 %v467, 4294901760
    %v1069 = vsub.f32 %v467, %v1068
    %v1070 = vand.u32 %v1069, 4294901760
    %1071 = vmatpush.msra.mxu0 %v1070
    %v1072 = vand.u32 %v466, 4294901760
    %v1073 = vsub.f32 %v466, %v1072
    %v1074 = vand.u32 %v1073, 4294901760
    %1075 = vmatpush.msra.mxu0 %v1074
    %v1076 = vand.u32 %v465, 4294901760
    %v1077 = vsub.f32 %v465, %v1076
    %v1078 = vand.u32 %v1077, 4294901760
    %1079 = vmatpush.msra.mxu0 %v1078
    %v1080 = vand.u32 %v464, 4294901760
    %v1081 = vsub.f32 %v464, %v1080
    %v1082 = vand.u32 %v1081, 4294901760
    %1083 = vmatpush.msra.mxu0 %v1082
    %v1084 = vand.u32 %v463, 4294901760
    %v1085 = vsub.f32 %v463, %v1084
    %v1086 = vand.u32 %v1085, 4294901760
    %1087 = vmatpush.msra.mxu0 %v1086
    %v1088 = vand.u32 %v462, 4294901760
    %v1089 = vsub.f32 %v462, %v1088
    %v1090 = vand.u32 %v1089, 4294901760
    %1091 = vmatpush.msra.mxu0 %v1090
    %v1092 = vand.u32 %v461, 4294901760
    %v1093 = vsub.f32 %v461, %v1092
    %v1094 = vand.u32 %v1093, 4294901760
    %1095 = vmatpush.msra.mxu0 %v1094
    %v1096 = vand.u32 %v460, 4294901760
    %v1097 = vsub.f32 %v460, %v1096
    %v1098 = vand.u32 %v1097, 4294901760
    %1099 = vmatpush.msra.mxu0 %v1098
    %v1100 = vand.u32 %v459, 4294901760
    %v1101 = vsub.f32 %v459, %v1100
    %v1102 = vand.u32 %v1101, 4294901760
    %1103 = vmatpush.msra.mxu0 %v1102
    %v1104 = vand.u32 %v458, 4294901760
    %v1105 = vsub.f32 %v458, %v1104
    %v1106 = vand.u32 %v1105, 4294901760
    %1107 = vmatpush.msra.mxu0 %v1106
    %v1108 = vand.u32 %v457, 4294901760
    %v1109 = vsub.f32 %v457, %v1108
    %v1110 = vand.u32 %v1109, 4294901760
    %1111 = vmatpush.msra.mxu0 %v1110
    %v1112 = vand.u32 %v456, 4294901760
    %v1113 = vsub.f32 %v456, %v1112
    %v1114 = vand.u32 %v1113, 4294901760
    %1115 = vmatpush.msra.mxu0 %v1114
    %v1116 = vand.u32 %v439, 4294901760
    %1117 = vmatmul.f32.gmra.mxu0 %v1116
    %v1118 = vpop.f32.mrf.mxu0
    %v1119 = vadd.f32 %v1050, %v1118
    %1120 = vdwg.mxu0
    %v1121 = vand.u32 %v471, 4294901760
    %1122 = vmatpush.msra.mxu0 %v1121
    %v1123 = vand.u32 %v470, 4294901760
    %1124 = vmatpush.msra.mxu0 %v1123
    %v1125 = vand.u32 %v469, 4294901760
    %1126 = vmatpush.msra.mxu0 %v1125
    %v1127 = vand.u32 %v468, 4294901760
    %1128 = vmatpush.msra.mxu0 %v1127
    %v1129 = vand.u32 %v467, 4294901760
    %1130 = vmatpush.msra.mxu0 %v1129
    %v1131 = vand.u32 %v466, 4294901760
    %1132 = vmatpush.msra.mxu0 %v1131
    %v1133 = vand.u32 %v465, 4294901760
    %1134 = vmatpush.msra.mxu0 %v1133
    %v1135 = vand.u32 %v464, 4294901760
    %1136 = vmatpush.msra.mxu0 %v1135
    %v1137 = vand.u32 %v463, 4294901760
    %1138 = vmatpush.msra.mxu0 %v1137
    %v1139 = vand.u32 %v462, 4294901760
    %1140 = vmatpush.msra.mxu0 %v1139
    %v1141 = vand.u32 %v461, 4294901760
    %1142 = vmatpush.msra.mxu0 %v1141
    %v1143 = vand.u32 %v460, 4294901760
    %1144 = vmatpush.msra.mxu0 %v1143
    %v1145 = vand.u32 %v459, 4294901760
    %1146 = vmatpush.msra.mxu0 %v1145
    %v1147 = vand.u32 %v458, 4294901760
    %1148 = vmatpush.msra.mxu0 %v1147
    %v1149 = vand.u32 %v457, 4294901760
    %1150 = vmatpush.msra.mxu0 %v1149
    %v1151 = vand.u32 %v456, 4294901760
    %1152 = vmatpush.msra.mxu0 %v1151
    %v1153 = vand.u32 %v439, 4294901760
    %1154 = vmatmul.f32.gmra.mxu0 %v1153
    %v1155 = vpop.f32.mrf.mxu0
    %v1156 = vadd.f32 %v1119, %v1155
    %1157 = vdwg.mxu0
    %v1158 = vmax.f32 %v1156, 0.0
    %v1159 = vld [vmem:[%s5] sm:$0xff]
    %v1160 = vld [vmem:[%s5 + $0x8] sm:$0xff]
    %v1161 = vld [vmem:[%s5 + $0x10] sm:$0xff]
    %v1162 = vld [vmem:[%s5 + $0x18] sm:$0xff]
    %v1163 = vld [vmem:[%s5 + $0x20] sm:$0xff]
    %v1164 = vld [vmem:[%s5 + $0x28] sm:$0xff]
    %v1165 = vld [vmem:[%s5 + $0x30] sm:$0xff]
    %v1166 = vld [vmem:[%s5 + $0x38] sm:$0xff]
    %v1167 = vld [vmem:[%s5 + $0x40] sm:$0xff]
    %v1168 = vld [vmem:[%s5 + $0x48] sm:$0xff]
    %v1169 = vld [vmem:[%s5 + $0x50] sm:$0xff]
    %v1170 = vld [vmem:[%s5 + $0x58] sm:$0xff]
    %v1171 = vld [vmem:[%s5 + $0x60] sm:$0xff]
    %v1172 = vld [vmem:[%s5 + $0x68] sm:$0xff]
    %v1173 = vld [vmem:[%s5 + $0x70] sm:$0xff]
    %v1174 = vld [vmem:[%s5 + $0x78] sm:$0xff]
    %v1175 = vld [vmem:[%s6] sm:$0x1]
    %v1177 = vperm.slane %v1175, 0
    %v1179 = vand.u32 %v1174, 4294901760
    %1180 = vmatpush.msra.mxu0 %v1179
    %v1181 = vand.u32 %v1173, 4294901760
    %1182 = vmatpush.msra.mxu0 %v1181
    %v1183 = vand.u32 %v1172, 4294901760
    %1184 = vmatpush.msra.mxu0 %v1183
    %v1185 = vand.u32 %v1171, 4294901760
    %1186 = vmatpush.msra.mxu0 %v1185
    %v1187 = vand.u32 %v1170, 4294901760
    %1188 = vmatpush.msra.mxu0 %v1187
    %v1189 = vand.u32 %v1169, 4294901760
    %1190 = vmatpush.msra.mxu0 %v1189
    %v1191 = vand.u32 %v1168, 4294901760
    %1192 = vmatpush.msra.mxu0 %v1191
    %v1193 = vand.u32 %v1167, 4294901760
    %1194 = vmatpush.msra.mxu0 %v1193
    %v1195 = vand.u32 %v1166, 4294901760
    %1196 = vmatpush.msra.mxu0 %v1195
    %v1197 = vand.u32 %v1165, 4294901760
    %1198 = vmatpush.msra.mxu0 %v1197
    %v1199 = vand.u32 %v1164, 4294901760
    %1200 = vmatpush.msra.mxu0 %v1199
    %v1201 = vand.u32 %v1163, 4294901760
    %1202 = vmatpush.msra.mxu0 %v1201
    %v1203 = vand.u32 %v1162, 4294901760
    %1204 = vmatpush.msra.mxu0 %v1203
    %v1205 = vand.u32 %v1161, 4294901760
    %1206 = vmatpush.msra.mxu0 %v1205
    %v1207 = vand.u32 %v1160, 4294901760
    %1208 = vmatpush.msra.mxu0 %v1207
    %v1209 = vand.u32 %v1159, 4294901760
    %1210 = vmatpush.msra.mxu0 %v1209
    %v1211 = vand.u32 %v1158, 4294901760
    %v1212 = vsub.f32 %v1158, %v1211
    %v1213 = vand.u32 %v1212, 4294901760
    %v1214 = vsub.f32 %v1212, %v1213
    %v1215 = vand.u32 %v1214, 4294901760
    %1216 = vmatmul.f32.gmra.mxu0 %v1215
    %v1217 = vpop.f32.mrf.mxu0
    %v1218 = vadd.f32 %v1177, %v1217
    %1219 = vdwg.mxu0
    %v1220 = vand.u32 %v1174, 4294901760
    %v1221 = vsub.f32 %v1174, %v1220
    %v1222 = vand.u32 %v1221, 4294901760
    %v1223 = vsub.f32 %v1221, %v1222
    %v1224 = vand.u32 %v1223, 4294901760
    %1225 = vmatpush.msra.mxu0 %v1224
    %v1226 = vand.u32 %v1173, 4294901760
    %v1227 = vsub.f32 %v1173, %v1226
    %v1228 = vand.u32 %v1227, 4294901760
    %v1229 = vsub.f32 %v1227, %v1228
    %v1230 = vand.u32 %v1229, 4294901760
    %1231 = vmatpush.msra.mxu0 %v1230
    %v1232 = vand.u32 %v1172, 4294901760
    %v1233 = vsub.f32 %v1172, %v1232
    %v1234 = vand.u32 %v1233, 4294901760
    %v1235 = vsub.f32 %v1233, %v1234
    %v1236 = vand.u32 %v1235, 4294901760
    %1237 = vmatpush.msra.mxu0 %v1236
    %v1238 = vand.u32 %v1171, 4294901760
    %v1239 = vsub.f32 %v1171, %v1238
    %v1240 = vand.u32 %v1239, 4294901760
    %v1241 = vsub.f32 %v1239, %v1240
    %v1242 = vand.u32 %v1241, 4294901760
    %1243 = vmatpush.msra.mxu0 %v1242
    %v1244 = vand.u32 %v1170, 4294901760
    %v1245 = vsub.f32 %v1170, %v1244
    %v1246 = vand.u32 %v1245, 4294901760
    %v1247 = vsub.f32 %v1245, %v1246
    %v1248 = vand.u32 %v1247, 4294901760
    %1249 = vmatpush.msra.mxu0 %v1248
    %v1250 = vand.u32 %v1169, 4294901760
    %v1251 = vsub.f32 %v1169, %v1250
    %v1252 = vand.u32 %v1251, 4294901760
    %v1253 = vsub.f32 %v1251, %v1252
    %v1254 = vand.u32 %v1253, 4294901760
    %1255 = vmatpush.msra.mxu0 %v1254
    %v1256 = vand.u32 %v1168, 4294901760
    %v1257 = vsub.f32 %v1168, %v1256
    %v1258 = vand.u32 %v1257, 4294901760
    %v1259 = vsub.f32 %v1257, %v1258
    %v1260 = vand.u32 %v1259, 4294901760
    %1261 = vmatpush.msra.mxu0 %v1260
    %v1262 = vand.u32 %v1167, 4294901760
    %v1263 = vsub.f32 %v1167, %v1262
    %v1264 = vand.u32 %v1263, 4294901760
    %v1265 = vsub.f32 %v1263, %v1264
    %v1266 = vand.u32 %v1265, 4294901760
    %1267 = vmatpush.msra.mxu0 %v1266
    %v1268 = vand.u32 %v1166, 4294901760
    %v1269 = vsub.f32 %v1166, %v1268
    %v1270 = vand.u32 %v1269, 4294901760
    %v1271 = vsub.f32 %v1269, %v1270
    %v1272 = vand.u32 %v1271, 4294901760
    %1273 = vmatpush.msra.mxu0 %v1272
    %v1274 = vand.u32 %v1165, 4294901760
    %v1275 = vsub.f32 %v1165, %v1274
    %v1276 = vand.u32 %v1275, 4294901760
    %v1277 = vsub.f32 %v1275, %v1276
    %v1278 = vand.u32 %v1277, 4294901760
    %1279 = vmatpush.msra.mxu0 %v1278
    %v1280 = vand.u32 %v1164, 4294901760
    %v1281 = vsub.f32 %v1164, %v1280
    %v1282 = vand.u32 %v1281, 4294901760
    %v1283 = vsub.f32 %v1281, %v1282
    %v1284 = vand.u32 %v1283, 4294901760
    %1285 = vmatpush.msra.mxu0 %v1284
    %v1286 = vand.u32 %v1163, 4294901760
    %v1287 = vsub.f32 %v1163, %v1286
    %v1288 = vand.u32 %v1287, 4294901760
    %v1289 = vsub.f32 %v1287, %v1288
    %v1290 = vand.u32 %v1289, 4294901760
    %1291 = vmatpush.msra.mxu0 %v1290
    %v1292 = vand.u32 %v1162, 4294901760
    %v1293 = vsub.f32 %v1162, %v1292
    %v1294 = vand.u32 %v1293, 4294901760
    %v1295 = vsub.f32 %v1293, %v1294
    %v1296 = vand.u32 %v1295, 4294901760
    %1297 = vmatpush.msra.mxu0 %v1296
    %v1298 = vand.u32 %v1161, 4294901760
    %v1299 = vsub.f32 %v1161, %v1298
    %v1300 = vand.u32 %v1299, 4294901760
    %v1301 = vsub.f32 %v1299, %v1300
    %v1302 = vand.u32 %v1301, 4294901760
    %1303 = vmatpush.msra.mxu0 %v1302
    %v1304 = vand.u32 %v1160, 4294901760
    %v1305 = vsub.f32 %v1160, %v1304
    %v1306 = vand.u32 %v1305, 4294901760
    %v1307 = vsub.f32 %v1305, %v1306
    %v1308 = vand.u32 %v1307, 4294901760
    %1309 = vmatpush.msra.mxu0 %v1308
    %v1310 = vand.u32 %v1159, 4294901760
    %v1311 = vsub.f32 %v1159, %v1310
    %v1312 = vand.u32 %v1311, 4294901760
    %v1313 = vsub.f32 %v1311, %v1312
    %v1314 = vand.u32 %v1313, 4294901760
    %1315 = vmatpush.msra.mxu0 %v1314
    %v1316 = vand.u32 %v1158, 4294901760
    %1317 = vmatmul.f32.gmra.mxu0 %v1316
    %v1318 = vpop.f32.mrf.mxu0
    %v1319 = vadd.f32 %v1218, %v1318
    %1320 = vdwg.mxu0
    %v1321 = vand.u32 %v1174, 4294901760
    %v1322 = vsub.f32 %v1174, %v1321
    %1323 = vmatpush.msra.mxu0 %v1322
    %v1324 = vand.u32 %v1173, 4294901760
    %v1325 = vsub.f32 %v1173, %v1324
    %1326 = vmatpush.msra.mxu0 %v1325
    %v1327 = vand.u32 %v1172, 4294901760
    %v1328 = vsub.f32 %v1172, %v1327
    %1329 = vmatpush.msra.mxu0 %v1328
    %v1330 = vand.u32 %v1171, 4294901760
    %v1331 = vsub.f32 %v1171, %v1330
    %1332 = vmatpush.msra.mxu0 %v1331
    %v1333 = vand.u32 %v1170, 4294901760
    %v1334 = vsub.f32 %v1170, %v1333
    %1335 = vmatpush.msra.mxu0 %v1334
    %v1336 = vand.u32 %v1169, 4294901760
    %v1337 = vsub.f32 %v1169, %v1336
    %1338 = vmatpush.msra.mxu0 %v1337
    %v1339 = vand.u32 %v1168, 4294901760
    %v1340 = vsub.f32 %v1168, %v1339
    %1341 = vmatpush.msra.mxu0 %v1340
    %v1342 = vand.u32 %v1167, 4294901760
    %v1343 = vsub.f32 %v1167, %v1342
    %1344 = vmatpush.msra.mxu0 %v1343
    %v1345 = vand.u32 %v1166, 4294901760
    %v1346 = vsub.f32 %v1166, %v1345
    %1347 = vmatpush.msra.mxu0 %v1346
    %v1348 = vand.u32 %v1165, 4294901760
    %v1349 = vsub.f32 %v1165, %v1348
    %1350 = vmatpush.msra.mxu0 %v1349
    %v1351 = vand.u32 %v1164, 4294901760
    %v1352 = vsub.f32 %v1164, %v1351
    %1353 = vmatpush.msra.mxu0 %v1352
    %v1354 = vand.u32 %v1163, 4294901760
    %v1355 = vsub.f32 %v1163, %v1354
    %1356 = vmatpush.msra.mxu0 %v1355
    %v1357 = vand.u32 %v1162, 4294901760
    %v1358 = vsub.f32 %v1162, %v1357
    %1359 = vmatpush.msra.mxu0 %v1358
    %v1360 = vand.u32 %v1161, 4294901760
    %v1361 = vsub.f32 %v1161, %v1360
    %1362 = vmatpush.msra.mxu0 %v1361
    %v1363 = vand.u32 %v1160, 4294901760
    %v1364 = vsub.f32 %v1160, %v1363
    %1365 = vmatpush.msra.mxu0 %v1364
    %v1366 = vand.u32 %v1159, 4294901760
    %v1367 = vsub.f32 %v1159, %v1366
    %1368 = vmatpush.msra.mxu0 %v1367
    %v1369 = vand.u32 %v1158, 4294901760
    %v1370 = vsub.f32 %v1158, %v1369
    %1371 = vmatmul.f32.gmra.mxu0 %v1370
    %v1372 = vpop.f32.mrf.mxu0
    %v1373 = vadd.f32 %v1319, %v1372
    %1374 = vdwg.mxu0
    %v1375 = vand.u32 %v1174, 4294901760
    %1376 = vmatpush.msra.mxu0 %v1375
    %v1377 = vand.u32 %v1173, 4294901760
    %1378 = vmatpush.msra.mxu0 %v1377
    %v1379 = vand.u32 %v1172, 4294901760
    %1380 = vmatpush.msra.mxu0 %v1379
    %v1381 = vand.u32 %v1171, 4294901760
    %1382 = vmatpush.msra.mxu0 %v1381
    %v1383 = vand.u32 %v1170, 4294901760
    %1384 = vmatpush.msra.mxu0 %v1383
    %v1385 = vand.u32 %v1169, 4294901760
    %1386 = vmatpush.msra.mxu0 %v1385
    %v1387 = vand.u32 %v1168, 4294901760
    %1388 = vmatpush.msra.mxu0 %v1387
    %v1389 = vand.u32 %v1167, 4294901760
    %1390 = vmatpush.msra.mxu0 %v1389
    %v1391 = vand.u32 %v1166, 4294901760
    %1392 = vmatpush.msra.mxu0 %v1391
    %v1393 = vand.u32 %v1165, 4294901760
    %1394 = vmatpush.msra.mxu0 %v1393
    %v1395 = vand.u32 %v1164, 4294901760
    %1396 = vmatpush.msra.mxu0 %v1395
    %v1397 = vand.u32 %v1163, 4294901760
    %1398 = vmatpush.msra.mxu0 %v1397
    %v1399 = vand.u32 %v1162, 4294901760
    %1400 = vmatpush.msra.mxu0 %v1399
    %v1401 = vand.u32 %v1161, 4294901760
    %1402 = vmatpush.msra.mxu0 %v1401
    %v1403 = vand.u32 %v1160, 4294901760
    %1404 = vmatpush.msra.mxu0 %v1403
    %v1405 = vand.u32 %v1159, 4294901760
    %1406 = vmatpush.msra.mxu0 %v1405
    %v1407 = vand.u32 %v1158, 4294901760
    %v1408 = vsub.f32 %v1158, %v1407
    %v1409 = vand.u32 %v1408, 4294901760
    %1410 = vmatmul.f32.gmra.mxu0 %v1409
    %v1411 = vpop.f32.mrf.mxu0
    %v1412 = vadd.f32 %v1373, %v1411
    %1413 = vdwg.mxu0
    %v1414 = vand.u32 %v1174, 4294901760
    %v1415 = vsub.f32 %v1174, %v1414
    %v1416 = vand.u32 %v1415, 4294901760
    %1417 = vmatpush.msra.mxu0 %v1416
    %v1418 = vand.u32 %v1173, 4294901760
    %v1419 = vsub.f32 %v1173, %v1418
    %v1420 = vand.u32 %v1419, 4294901760
    %1421 = vmatpush.msra.mxu0 %v1420
    %v1422 = vand.u32 %v1172, 4294901760
    %v1423 = vsub.f32 %v1172, %v1422
    %v1424 = vand.u32 %v1423, 4294901760
    %1425 = vmatpush.msra.mxu0 %v1424
    %v1426 = vand.u32 %v1171, 4294901760
    %v1427 = vsub.f32 %v1171, %v1426
    %v1428 = vand.u32 %v1427, 4294901760
    %1429 = vmatpush.msra.mxu0 %v1428
    %v1430 = vand.u32 %v1170, 4294901760
    %v1431 = vsub.f32 %v1170, %v1430
    %v1432 = vand.u32 %v1431, 4294901760
    %1433 = vmatpush.msra.mxu0 %v1432
    %v1434 = vand.u32 %v1169, 4294901760
    %v1435 = vsub.f32 %v1169, %v1434
    %v1436 = vand.u32 %v1435, 4294901760
    %1437 = vmatpush.msra.mxu0 %v1436
    %v1438 = vand.u32 %v1168, 4294901760
    %v1439 = vsub.f32 %v1168, %v1438
    %v1440 = vand.u32 %v1439, 4294901760
    %1441 = vmatpush.msra.mxu0 %v1440
    %v1442 = vand.u32 %v1167, 4294901760
    %v1443 = vsub.f32 %v1167, %v1442
    %v1444 = vand.u32 %v1443, 4294901760
    %1445 = vmatpush.msra.mxu0 %v1444
    %v1446 = vand.u32 %v1166, 4294901760
    %v1447 = vsub.f32 %v1166, %v1446
    %v1448 = vand.u32 %v1447, 4294901760
    %1449 = vmatpush.msra.mxu0 %v1448
    %v1450 = vand.u32 %v1165, 4294901760
    %v1451 = vsub.f32 %v1165, %v1450
    %v1452 = vand.u32 %v1451, 4294901760
    %1453 = vmatpush.msra.mxu0 %v1452
    %v1454 = vand.u32 %v1164, 4294901760
    %v1455 = vsub.f32 %v1164, %v1454
    %v1456 = vand.u32 %v1455, 4294901760
    %1457 = vmatpush.msra.mxu0 %v1456
    %v1458 = vand.u32 %v1163, 4294901760
    %v1459 = vsub.f32 %v1163, %v1458
    %v1460 = vand.u32 %v1459, 4294901760
    %1461 = vmatpush.msra.mxu0 %v1460
    %v1462 = vand.u32 %v1162, 4294901760
    %v1463 = vsub.f32 %v1162, %v1462
    %v1464 = vand.u32 %v1463, 4294901760
    %1465 = vmatpush.msra.mxu0 %v1464
    %v1466 = vand.u32 %v1161, 4294901760
    %v1467 = vsub.f32 %v1161, %v1466
    %v1468 = vand.u32 %v1467, 4294901760
    %1469 = vmatpush.msra.mxu0 %v1468
    %v1470 = vand.u32 %v1160, 4294901760
    %v1471 = vsub.f32 %v1160, %v1470
    %v1472 = vand.u32 %v1471, 4294901760
    %1473 = vmatpush.msra.mxu0 %v1472
    %v1474 = vand.u32 %v1159, 4294901760
    %v1475 = vsub.f32 %v1159, %v1474
    %v1476 = vand.u32 %v1475, 4294901760
    %1477 = vmatpush.msra.mxu0 %v1476
    %v1478 = vand.u32 %v1158, 4294901760
    %1479 = vmatmul.f32.gmra.mxu0 %v1478
    %v1480 = vpop.f32.mrf.mxu0
    %v1481 = vadd.f32 %v1412, %v1480
    %1482 = vdwg.mxu0
    %v1483 = vand.u32 %v1174, 4294901760
    %1484 = vmatpush.msra.mxu0 %v1483
    %v1485 = vand.u32 %v1173, 4294901760
    %1486 = vmatpush.msra.mxu0 %v1485
    %v1487 = vand.u32 %v1172, 4294901760
    %1488 = vmatpush.msra.mxu0 %v1487
    %v1489 = vand.u32 %v1171, 4294901760
    %1490 = vmatpush.msra.mxu0 %v1489
    %v1491 = vand.u32 %v1170, 4294901760
    %1492 = vmatpush.msra.mxu0 %v1491
    %v1493 = vand.u32 %v1169, 4294901760
    %1494 = vmatpush.msra.mxu0 %v1493
    %v1495 = vand.u32 %v1168, 4294901760
    %1496 = vmatpush.msra.mxu0 %v1495
    %v1497 = vand.u32 %v1167, 4294901760
    %1498 = vmatpush.msra.mxu0 %v1497
    %v1499 = vand.u32 %v1166, 4294901760
    %1500 = vmatpush.msra.mxu0 %v1499
    %v1501 = vand.u32 %v1165, 4294901760
    %1502 = vmatpush.msra.mxu0 %v1501
    %v1503 = vand.u32 %v1164, 4294901760
    %1504 = vmatpush.msra.mxu0 %v1503
    %v1505 = vand.u32 %v1163, 4294901760
    %1506 = vmatpush.msra.mxu0 %v1505
    %v1507 = vand.u32 %v1162, 4294901760
    %1508 = vmatpush.msra.mxu0 %v1507
    %v1509 = vand.u32 %v1161, 4294901760
    %1510 = vmatpush.msra.mxu0 %v1509
    %v1511 = vand.u32 %v1160, 4294901760
    %1512 = vmatpush.msra.mxu0 %v1511
    %v1513 = vand.u32 %v1159, 4294901760
    %1514 = vmatpush.msra.mxu0 %v1513
    %v1515 = vand.u32 %v1158, 4294901760
    %1516 = vmatmul.f32.gmra.mxu0 %v1515
    %v1517 = vpop.f32.mrf.mxu0
    %v1518 = vadd.f32 %v1481, %v1517
    %1519 = vdwg.mxu0
    %v1520 = vmax.f32 %v1518, 0.0
    %v1521 = vld [vmem:[%s7] sm:$0xff]
    %v1522 = vld [vmem:[%s7 + $0x8] sm:$0xff]
    %v1523 = vld [vmem:[%s7 + $0x10] sm:$0xff]
    %v1524 = vld [vmem:[%s7 + $0x18] sm:$0xff]
    %v1525 = vld [vmem:[%s7 + $0x20] sm:$0xff]
    %v1526 = vld [vmem:[%s7 + $0x28] sm:$0xff]
    %v1527 = vld [vmem:[%s7 + $0x30] sm:$0xff]
    %v1528 = vld [vmem:[%s7 + $0x38] sm:$0xff]
    %v1529 = vld [vmem:[%s8] sm:$0x1]
    %v1531 = vperm.slane %v1529, 0
    %vm1533 = vcmask 523264
    %v1535 = vsel %vm1533, %v1520, 0
    %1537 = vmatpush.msra.mxu0 0.0
    %1538 = vmatpush.msra.mxu0 0.0
    %1539 = vmatpush.msra.mxu0 0.0
    %1540 = vmatpush.msra.mxu0 0.0
    %1541 = vmatpush.msra.mxu0 0.0
    %1542 = vmatpush.msra.mxu0 0.0
    %1543 = vmatpush.msra.mxu0 0.0
    %1544 = vmatpush.msra.mxu0 0.0
    %v1545 = vand.u32 %v1528, 4294901760
    %1546 = vmatpush.msra.mxu0 %v1545
    %v1547 = vand.u32 %v1527, 4294901760
    %1548 = vmatpush.msra.mxu0 %v1547
    %v1549 = vand.u32 %v1526, 4294901760
    %1550 = vmatpush.msra.mxu0 %v1549
    %v1551 = vand.u32 %v1525, 4294901760
    %1552 = vmatpush.msra.mxu0 %v1551
    %v1553 = vand.u32 %v1524, 4294901760
    %1554 = vmatpush.msra.mxu0 %v1553
    %v1555 = vand.u32 %v1523, 4294901760
    %1556 = vmatpush.msra.mxu0 %v1555
    %v1557 = vand.u32 %v1522, 4294901760
    %1558 = vmatpush.msra.mxu0 %v1557
    %v1559 = vand.u32 %v1521, 4294901760
    %1560 = vmatpush.msra.mxu0 %v1559
    %v1561 = vand.u32 %v1535, 4294901760
    %v1562 = vsub.f32 %v1535, %v1561
    %v1563 = vand.u32 %v1562, 4294901760
    %v1564 = vsub.f32 %v1562, %v1563
    %v1565 = vand.u32 %v1564, 4294901760
    %1566 = vmatmul.f32.gmra.mxu0 %v1565
    %v1567 = vpop.f32.mrf.mxu0
    %v1568 = vadd.f32 %v1531, %v1567
    %1569 = vdwg.mxu0
    %1570 = vmatpush.msra.mxu0 0.0
    %1571 = vmatpush.msra.mxu0 0.0
    %1572 = vmatpush.msra.mxu0 0.0
    %1573 = vmatpush.msra.mxu0 0.0
    %1574 = vmatpush.msra.mxu0 0.0
    %1575 = vmatpush.msra.mxu0 0.0
    %1576 = vmatpush.msra.mxu0 0.0
    %1577 = vmatpush.msra.mxu0 0.0
    %v1578 = vand.u32 %v1528, 4294901760
    %v1579 = vsub.f32 %v1528, %v1578
    %v1580 = vand.u32 %v1579, 4294901760
    %v1581 = vsub.f32 %v1579, %v1580
    %v1582 = vand.u32 %v1581, 4294901760
    %1583 = vmatpush.msra.mxu0 %v1582
    %v1584 = vand.u32 %v1527, 4294901760
    %v1585 = vsub.f32 %v1527, %v1584
    %v1586 = vand.u32 %v1585, 4294901760
    %v1587 = vsub.f32 %v1585, %v1586
    %v1588 = vand.u32 %v1587, 4294901760
    %1589 = vmatpush.msra.mxu0 %v1588
    %v1590 = vand.u32 %v1526, 4294901760
    %v1591 = vsub.f32 %v1526, %v1590
    %v1592 = vand.u32 %v1591, 4294901760
    %v1593 = vsub.f32 %v1591, %v1592
    %v1594 = vand.u32 %v1593, 4294901760
    %1595 = vmatpush.msra.mxu0 %v1594
    %v1596 = vand.u32 %v1525, 4294901760
    %v1597 = vsub.f32 %v1525, %v1596
    %v1598 = vand.u32 %v1597, 4294901760
    %v1599 = vsub.f32 %v1597, %v1598
    %v1600 = vand.u32 %v1599, 4294901760
    %1601 = vmatpush.msra.mxu0 %v1600
    %v1602 = vand.u32 %v1524, 4294901760
    %v1603 = vsub.f32 %v1524, %v1602
    %v1604 = vand.u32 %v1603, 4294901760
    %v1605 = vsub.f32 %v1603, %v1604
    %v1606 = vand.u32 %v1605, 4294901760
    %1607 = vmatpush.msra.mxu0 %v1606
    %v1608 = vand.u32 %v1523, 4294901760
    %v1609 = vsub.f32 %v1523, %v1608
    %v1610 = vand.u32 %v1609, 4294901760
    %v1611 = vsub.f32 %v1609, %v1610
    %v1612 = vand.u32 %v1611, 4294901760
    %1613 = vmatpush.msra.mxu0 %v1612
    %v1614 = vand.u32 %v1522, 4294901760
    %v1615 = vsub.f32 %v1522, %v1614
    %v1616 = vand.u32 %v1615, 4294901760
    %v1617 = vsub.f32 %v1615, %v1616
    %v1618 = vand.u32 %v1617, 4294901760
    %1619 = vmatpush.msra.mxu0 %v1618
    %v1620 = vand.u32 %v1521, 4294901760
    %v1621 = vsub.f32 %v1521, %v1620
    %v1622 = vand.u32 %v1621, 4294901760
    %v1623 = vsub.f32 %v1621, %v1622
    %v1624 = vand.u32 %v1623, 4294901760
    %1625 = vmatpush.msra.mxu0 %v1624
    %v1626 = vand.u32 %v1535, 4294901760
    %1627 = vmatmul.f32.gmra.mxu0 %v1626
    %v1628 = vpop.f32.mrf.mxu0
    %v1629 = vadd.f32 %v1568, %v1628
    %1630 = vdwg.mxu0
    %1631 = vmatpush.msra.mxu0 0.0
    %1632 = vmatpush.msra.mxu0 0.0
    %1633 = vmatpush.msra.mxu0 0.0
    %1634 = vmatpush.msra.mxu0 0.0
    %1635 = vmatpush.msra.mxu0 0.0
    %1636 = vmatpush.msra.mxu0 0.0
    %1637 = vmatpush.msra.mxu0 0.0
    %1638 = vmatpush.msra.mxu0 0.0
    %v1639 = vand.u32 %v1528, 4294901760
    %v1640 = vsub.f32 %v1528, %v1639
    %1641 = vmatpush.msra.mxu0 %v1640
    %v1642 = vand.u32 %v1527, 4294901760
    %v1643 = vsub.f32 %v1527, %v1642
    %1644 = vmatpush.msra.mxu0 %v1643
    %v1645 = vand.u32 %v1526, 4294901760
    %v1646 = vsub.f32 %v1526, %v1645
    %1647 = vmatpush.msra.mxu0 %v1646
    %v1648 = vand.u32 %v1525, 4294901760
    %v1649 = vsub.f32 %v1525, %v1648
    %1650 = vmatpush.msra.mxu0 %v1649
    %v1651 = vand.u32 %v1524, 4294901760
    %v1652 = vsub.f32 %v1524, %v1651
    %1653 = vmatpush.msra.mxu0 %v1652
    %v1654 = vand.u32 %v1523, 4294901760
    %v1655 = vsub.f32 %v1523, %v1654
    %1656 = vmatpush.msra.mxu0 %v1655
    %v1657 = vand.u32 %v1522, 4294901760
    %v1658 = vsub.f32 %v1522, %v1657
    %1659 = vmatpush.msra.mxu0 %v1658
    %v1660 = vand.u32 %v1521, 4294901760
    %v1661 = vsub.f32 %v1521, %v1660
    %1662 = vmatpush.msra.mxu0 %v1661
    %v1663 = vand.u32 %v1535, 4294901760
    %v1664 = vsub.f32 %v1535, %v1663
    %1665 = vmatmul.f32.gmra.mxu0 %v1664
    %v1666 = vpop.f32.mrf.mxu0
    %v1667 = vadd.f32 %v1629, %v1666
    %1668 = vdwg.mxu0
    %1669 = vmatpush.msra.mxu0 0.0
    %1670 = vmatpush.msra.mxu0 0.0
    %1671 = vmatpush.msra.mxu0 0.0
    %1672 = vmatpush.msra.mxu0 0.0
    %1673 = vmatpush.msra.mxu0 0.0
    %1674 = vmatpush.msra.mxu0 0.0
    %1675 = vmatpush.msra.mxu0 0.0
    %1676 = vmatpush.msra.mxu0 0.0
    %v1677 = vand.u32 %v1528, 4294901760
    %1678 = vmatpush.msra.mxu0 %v1677
    %v1679 = vand.u32 %v1527, 4294901760
    %1680 = vmatpush.msra.mxu0 %v1679
    %v1681 = vand.u32 %v1526, 4294901760
    %1682 = vmatpush.msra.mxu0 %v1681
    %v1683 = vand.u32 %v1525, 4294901760
    %1684 = vmatpush.msra.mxu0 %v1683
    %v1685 = vand.u32 %v1524, 4294901760
    %1686 = vmatpush.msra.mxu0 %v1685
    %v1687 = vand.u32 %v1523, 4294901760
    %1688 = vmatpush.msra.mxu0 %v1687
    %v1689 = vand.u32 %v1522, 4294901760
    %1690 = vmatpush.msra.mxu0 %v1689
    %v1691 = vand.u32 %v1521, 4294901760
    %1692 = vmatpush.msra.mxu0 %v1691
    %v1693 = vand.u32 %v1535, 4294901760
    %v1694 = vsub.f32 %v1535, %v1693
    %v1695 = vand.u32 %v1694, 4294901760
    %1696 = vmatmul.f32.gmra.mxu0 %v1695
    %v1697 = vpop.f32.mrf.mxu0
    %v1698 = vadd.f32 %v1667, %v1697
    %1699 = vdwg.mxu0
    %1700 = vmatpush.msra.mxu0 0.0
    %1701 = vmatpush.msra.mxu0 0.0
    %1702 = vmatpush.msra.mxu0 0.0
    %1703 = vmatpush.msra.mxu0 0.0
    %1704 = vmatpush.msra.mxu0 0.0
    %1705 = vmatpush.msra.mxu0 0.0
    %1706 = vmatpush.msra.mxu0 0.0
    %1707 = vmatpush.msra.mxu0 0.0
    %v1708 = vand.u32 %v1528, 4294901760
    %v1709 = vsub.f32 %v1528, %v1708
    %v1710 = vand.u32 %v1709, 4294901760
    %1711 = vmatpush.msra.mxu0 %v1710
    %v1712 = vand.u32 %v1527, 4294901760
    %v1713 = vsub.f32 %v1527, %v1712
    %v1714 = vand.u32 %v1713, 4294901760
    %1715 = vmatpush.msra.mxu0 %v1714
    %v1716 = vand.u32 %v1526, 4294901760
    %v1717 = vsub.f32 %v1526, %v1716
    %v1718 = vand.u32 %v1717, 4294901760
    %1719 = vmatpush.msra.mxu0 %v1718
    %v1720 = vand.u32 %v1525, 4294901760
    %v1721 = vsub.f32 %v1525, %v1720
    %v1722 = vand.u32 %v1721, 4294901760
    %1723 = vmatpush.msra.mxu0 %v1722
    %v1724 = vand.u32 %v1524, 4294901760
    %v1725 = vsub.f32 %v1524, %v1724
    %v1726 = vand.u32 %v1725, 4294901760
    %1727 = vmatpush.msra.mxu0 %v1726
    %v1728 = vand.u32 %v1523, 4294901760
    %v1729 = vsub.f32 %v1523, %v1728
    %v1730 = vand.u32 %v1729, 4294901760
    %1731 = vmatpush.msra.mxu0 %v1730
    %v1732 = vand.u32 %v1522, 4294901760
    %v1733 = vsub.f32 %v1522, %v1732
    %v1734 = vand.u32 %v1733, 4294901760
    %1735 = vmatpush.msra.mxu0 %v1734
    %v1736 = vand.u32 %v1521, 4294901760
    %v1737 = vsub.f32 %v1521, %v1736
    %v1738 = vand.u32 %v1737, 4294901760
    %1739 = vmatpush.msra.mxu0 %v1738
    %v1740 = vand.u32 %v1535, 4294901760
    %1741 = vmatmul.f32.gmra.mxu0 %v1740
    %v1742 = vpop.f32.mrf.mxu0
    %v1743 = vadd.f32 %v1698, %v1742
    %1744 = vdwg.mxu0
    %1745 = vmatpush.msra.mxu0 0.0
    %1746 = vmatpush.msra.mxu0 0.0
    %1747 = vmatpush.msra.mxu0 0.0
    %1748 = vmatpush.msra.mxu0 0.0
    %1749 = vmatpush.msra.mxu0 0.0
    %1750 = vmatpush.msra.mxu0 0.0
    %1751 = vmatpush.msra.mxu0 0.0
    %1752 = vmatpush.msra.mxu0 0.0
    %v1753 = vand.u32 %v1528, 4294901760
    %1754 = vmatpush.msra.mxu0 %v1753
    %v1755 = vand.u32 %v1527, 4294901760
    %1756 = vmatpush.msra.mxu0 %v1755
    %v1757 = vand.u32 %v1526, 4294901760
    %1758 = vmatpush.msra.mxu0 %v1757
    %v1759 = vand.u32 %v1525, 4294901760
    %1760 = vmatpush.msra.mxu0 %v1759
    %v1761 = vand.u32 %v1524, 4294901760
    %1762 = vmatpush.msra.mxu0 %v1761
    %v1763 = vand.u32 %v1523, 4294901760
    %1764 = vmatpush.msra.mxu0 %v1763
    %v1765 = vand.u32 %v1522, 4294901760
    %1766 = vmatpush.msra.mxu0 %v1765
    %v1767 = vand.u32 %v1521, 4294901760
    %1768 = vmatpush.msra.mxu0 %v1767
    %v1769 = vand.u32 %v1535, 4294901760
    %1770 = vmatmul.f32.gmra.mxu0 %v1769
    %v1771 = vpop.f32.mrf.mxu0
    %v1772 = vadd.f32 %v1743, %v1771
    %1773 = vdwg.mxu0
    %vm1774 = vcmask 25600
    %1775 = vst.msk [vmem:[#allocation5] sm:$0x3] %vm1774, %v1772
    // Predicated region
    $region42: #{tpu_custom_call.1} parent=1 // pred_check
      _
    $region43: #{tpu_custom_call.1} parent=1 // pred_check_branch
      %1777 = sbr.rel (0) target = $region45
    $region44: #{tpu_custom_call.1} parent=1 // pred_region
      %1779 = vsyncadd [#allocation4], 0
      %s1781 = sshll.u32 [#allocation5], 4
      %s1782 = int_to_ptr.vmem [resolvable:$true] %s1781
      %s1783 = sshll.u32 %s9, 4
      %s1784 = int_to_ptr.hbm [resolvable:$true] %s1783
      %1786 = dma.vmem_to_hbm [thread:$0]  %s1782, 32, %s1784, [#allocation4]
    $region45: #{tpu_custom_call.1} parent=1 // pred_fallthru
      _
    // Predicated region
    $region46: #{tpu_custom_call.1} parent=1 // pred_check
      _
    $region47: #{tpu_custom_call.1} parent=1 // pred_check_branch
      %1788 = sbr.rel (0) target = $region49
    $region48: #{tpu_custom_call.1} parent=1 // pred_region
      %1790 = dma.done [#allocation4], 32
    $region49: #{tpu_custom_call.1} parent=1 // pred_fallthru
      _
    %1791 = vsyncpa [#allocation3], 1
    %1792 = vsyncpa [#allocation4], 1

</llo_original>
